<compile_context>
chip_gen: v5e
topology: v5e:2x2
jax: 0.10.0
libtpu: 0.0.40
codegen_flags: <defaults>
</compile_context>

<pallas_src>
import functools
import math

import jax
import jax.numpy as jnp
from jax.experimental import pallas as pl
from jax.experimental.pallas import tpu as pltpu


def _round_up(x, m):
    return (x + m - 1) // m * m


def _vq_kernel(x_ref, r_ref, rsq_ref, o_ref, *, hardness, num_codes):
    """o = softmax(-hardness * ||x - r_j||^2, over j) @ r   (one row tile)."""
    x = x_ref[...]                                    # (tm, Dp) f32
    r = r_ref[...]                                    # (Mp, Dp) f32

    x_sq = jnp.sum(x * x, axis=-1, keepdims=True)     # (tm, 1)

    # x @ r^T on the MXU; squared distances via the norm expansion.
    xr = jax.lax.dot_general(
        x, r, dimension_numbers=(((1,), (1,)), ((), ())),
        preferred_element_type=jnp.float32)           # (tm, Mp)
    dist = x_sq + rsq_ref[...] - 2.0 * xr             # (tm, Mp)
    logits = (-hardness) * dist

    # Mask padded codewords so they get zero softmax weight.
    col = jax.lax.broadcasted_iota(jnp.int32, logits.shape, 1)
    logits = jnp.where(col < num_codes, logits, -jnp.inf)

    m = jnp.max(logits, axis=-1, keepdims=True)
    p = jnp.exp(logits - m)
    w = p * pl.reciprocal(jnp.sum(p, axis=-1, keepdims=True), approx=False)

    z = jnp.dot(w, r, preferred_element_type=jnp.float32)   # (tm, Dp)
    o_ref[...] = z.astype(o_ref.dtype)


def soft_to_hard_quantize(x, ref, hardness, *, tm=512):
    """x: (..., D) float, ref: (M, D) codebook.  Returns same shape as x."""
    orig_shape = x.shape
    D = orig_shape[-1]
    M = ref.shape[0]
    N = math.prod(orig_shape[:-1])

    Dp = _round_up(D, 128)
    Mp = _round_up(M, 128)
    tm = min(tm, _round_up(N, 8))          # tm is always a multiple of 8
    Np = _round_up(N, tm)

    x2 = jnp.pad(x.reshape(N, D).astype(jnp.float32),
                 ((0, Np - N), (0, Dp - D)))
    rp = jnp.pad(ref.astype(jnp.float32), ((0, Mp - M), (0, Dp - D)))
    rsq = jnp.sum(rp * rp, axis=-1)[None, :]           # (1, Mp), precomputed

    out = pl.pallas_call(
        functools.partial(_vq_kernel, hardness=float(hardness), num_codes=M),
        out_shape=jax.ShapeDtypeStruct((Np, Dp), jnp.float32),
        grid_spec=pltpu.PrefetchScalarGridSpec(
            num_scalar_prefetch=0,
            grid=(Np // tm,),
            in_specs=[
                pl.BlockSpec((tm, Dp), lambda i: (i, 0)),   # row tile of x
                pl.BlockSpec((Mp, Dp), lambda i: (0, 0)),   # codebook (bcast)
                pl.BlockSpec((1, Mp), lambda i: (0, 0)),    # ||r||^2  (bcast)
            ],
            out_specs=pl.BlockSpec((tm, Dp), lambda i: (i, 0)),
        ),
        compiler_params=pltpu.CompilerParams(
            dimension_semantics=("parallel",),
            vmem_limit_bytes=32 << 20),
    )(x2, rp, rsq)
    return out[:N, :D].reshape(orig_shape)


def _reference(x, ref, hardness):
    """Pure-JAX mirror of the torch forward (softmax over dim=0 = codewords)."""
    diff = x[None, ...] - ref[:, None, None, None, None, :]   # (M, D1..D5)
    sq = jnp.sum(diff * diff, axis=-1)                        # (M, D1..D4)
    y = jax.nn.softmax(-hardness * sq, axis=0)
    return jnp.einsum('m...,md->...d', y, ref)


if __name__ == "__main__":
    key = jax.random.PRNGKey(0)
    k_x, k_r = jax.random.split(key)

    D1, D2, D3, D4, D5 = 2, 4, 16, 16, 8
    M = 16
    hardness = 2.0

    x = jax.random.normal(k_x, (D1, D2, D3, D4, D5), jnp.float32)
    ref = jax.random.normal(k_r, (M, D5), jnp.float32)

    z = soft_to_hard_quantize(x, ref, hardness)
    z = jax.block_until_ready(z)
    assert z.shape == (D1, D2, D3, D4, D5), z.shape

    z_ref = jax.block_until_ready(_reference(x, ref, hardness))
    err = float(jnp.max(jnp.abs(z - z_ref)))
    assert err < 5e-3, f"max abs error {err}"
    print("KERNEL_OK")
</pallas_src>

<mosaic_0001>
module attributes {stable_mosaic.version = 11 : i64} {
  func.func @_vq_kernel(%arg0: i32, %arg1: memref<512x128xf32, #tpu.memory_space<vmem>>, %arg2: memref<128x128xf32, #tpu.memory_space<vmem>>, %arg3: memref<1x128xf32, #tpu.memory_space<vmem>>, %arg4: memref<512x128xf32, #tpu.memory_space<vmem>>) attributes {dimension_semantics = [#tpu.dimension_semantics<parallel>], iteration_bounds = array<i64: 4>, scalar_prefetch = 0 : i64, scratch_operands = 0 : i64, tpu.core_type = #tpu.core_type<tc>, window_params = [{transform_indices = @transform_0, window_bounds = array<i64: 512, 128>}, {pipeline_mode = #tpu.pipeline_mode<synchronous>, transform_indices = @transform_1, window_bounds = array<i64: 128, 128>}, {pipeline_mode = #tpu.pipeline_mode<synchronous>, transform_indices = @transform_2, window_bounds = array<i64: 1, 128>}, {transform_indices = @transform_3, window_bounds = array<i64: 512, 128>}]} {
    %c0 = arith.constant 0 : index
    %c0_0 = arith.constant 0 : index
    %0 = vector.load %arg1[%c0, %c0_0] : memref<512x128xf32, #tpu.memory_space<vmem>>, vector<512x128xf32>
    %c0_1 = arith.constant 0 : index
    %c0_2 = arith.constant 0 : index
    %1 = vector.load %arg2[%c0_1, %c0_2] : memref<128x128xf32, #tpu.memory_space<vmem>>, vector<128x128xf32>
    %2 = arith.mulf %0, %0 : vector<512x128xf32>
    %cst = arith.constant dense<0.000000e+00> : vector<512xf32>
    %3 = vector.multi_reduction <add>, %2, %cst [1] : vector<512x128xf32> to vector<512xf32>
    %4 = vector.shape_cast %3 : vector<512xf32> to vector<512x1xf32>
    %cst_3 = arith.constant dense<0.000000e+00> : vector<512x128xf32>
    %5 = tpu.matmul %0, %1, %cst_3 {dimension_numbers = #tpu.dot_dimension_numbers<[1], [1], [0], [0], [0, 0, 1, 0], [], []>} : vector<512x128xf32>, vector<128x128xf32>, vector<512x128xf32> -> vector<512x128xf32>
    %c0_4 = arith.constant 0 : index
    %c0_5 = arith.constant 0 : index
    %6 = vector.load %arg3[%c0_4, %c0_5] : memref<1x128xf32, #tpu.memory_space<vmem>>, vector<1x128xf32>
    %7 = vector.broadcast %4 : vector<512x1xf32> to vector<512x128xf32>
    %8 = vector.broadcast %6 : vector<1x128xf32> to vector<512x128xf32>
    %9 = arith.addf %7, %8 : vector<512x128xf32>
    %cst_6 = arith.constant 2.000000e+00 : f32
    %10 = vector.broadcast %cst_6 : f32 to vector<512x128xf32>
    %11 = arith.mulf %10, %5 : vector<512x128xf32>
    %12 = arith.subf %9, %11 : vector<512x128xf32>
    %cst_7 = arith.constant -2.000000e+00 : f32
    %13 = vector.broadcast %cst_7 : f32 to vector<512x128xf32>
    %14 = arith.mulf %13, %12 : vector<512x128xf32>
    %15 = tpu.iota {dimensions = array<i32: 1>} : vector<512x128xi32>
    %c16_i32 = arith.constant 16 : i32
    %16 = vector.broadcast %c16_i32 : i32 to vector<512x128xi32>
    %17 = arith.cmpi slt, %15, %16 : vector<512x128xi32>
    %cst_8 = arith.constant 0xFF800000 : f32
    %18 = vector.broadcast %cst_8 : f32 to vector<512x128xf32>
    %19 = arith.select %17, %14, %18 : vector<512x128xi1>, vector<512x128xf32>
    %cst_9 = arith.constant dense<0xFF800000> : vector<512xf32>
    %20 = vector.multi_reduction <maximumf>, %19, %cst_9 [1] : vector<512x128xf32> to vector<512xf32>
    %21 = vector.shape_cast %20 : vector<512xf32> to vector<512x1xf32>
    %22 = vector.broadcast %21 : vector<512x1xf32> to vector<512x128xf32>
    %23 = arith.subf %19, %22 : vector<512x128xf32>
    %24 = math.exp %23 : vector<512x128xf32>
    %cst_10 = arith.constant dense<0.000000e+00> : vector<512xf32>
    %25 = vector.multi_reduction <add>, %24, %cst_10 [1] : vector<512x128xf32> to vector<512xf32>
    %26 = vector.shape_cast %25 : vector<512xf32> to vector<512x1xf32>
    %27 = tpu.reciprocal %26 : vector<512x1xf32> -> vector<512x1xf32>
    %28 = vector.broadcast %27 : vector<512x1xf32> to vector<512x128xf32>
    %29 = arith.mulf %24, %28 : vector<512x128xf32>
    %cst_11 = arith.constant dense<0.000000e+00> : vector<512x128xf32>
    %30 = tpu.matmul %29, %1, %cst_11 {dimension_numbers = #tpu.dot_dimension_numbers<[1], [0], [0], [1], [0, 0, 1, 1], [], []>} : vector<512x128xf32>, vector<128x128xf32>, vector<512x128xf32> -> vector<512x128xf32>
    %c0_12 = arith.constant 0 : index
    %c0_13 = arith.constant 0 : index
    %31 = vector.load %arg4[%c0_12, %c0_13] : memref<512x128xf32, #tpu.memory_space<vmem>>, vector<512x128xf32>
    tpu.vector_store %arg4[%c0_12, %c0_13], %30 {strides = array<i32>} : memref<512x128xf32, #tpu.memory_space<vmem>>, vector<512x128xf32>,
    return
  }
  func.func @transform_0(%arg0: i32) -> (i32, i32) {
    %c0_i32 = arith.constant 0 : i32
    %c0_i32_0 = arith.constant 0 : i32
    return %arg0, %c0_i32 : i32, i32
  }
  func.func @transform_1(%arg0: i32) -> (i32, i32) {
    %c0_i32 = arith.constant 0 : i32
    %c0_i32_0 = arith.constant 0 : i32
    %c0_i32_1 = arith.constant 0 : i32
    return %c0_i32, %c0_i32_0 : i32, i32
  }
  func.func @transform_2(%arg0: i32) -> (i32, i32) {
    %c0_i32 = arith.constant 0 : i32
    %c0_i32_0 = arith.constant 0 : i32
    %c0_i32_1 = arith.constant 0 : i32
    return %c0_i32, %c0_i32_0 : i32, i32
  }
  func.func @transform_3(%arg0: i32) -> (i32, i32) {
    %c0_i32 = arith.constant 0 : i32
    %c0_i32_0 = arith.constant 0 : i32
    return %arg0, %c0_i32 : i32, i32
  }
}

</mosaic_0001>

<llo_original>
// kernel: tpu_custom_call.1
$region0: #{tpu_custom_call.1}
  #allocation0 [shape = 'u32[]', space=smem, size = 0x4, offset = 0x4, fixed_abs, tag = 'smem constant byte address 0x4 - core index']
  #allocation1 [shape = 'u32[72,128]{1,0:T(1,128)}', space=vmem, size = 0x9000, scoped, tag = 'internal scratch']
  %s0 = inlined_call_operand.hbm [shape: f32[2048,128], index: 0, kind: input, shape index: {}]
  %s1 = inlined_call_operand.hbm [shape: f32[128,128], index: 1, kind: input, shape index: {}]
  %s2 = inlined_call_operand.vmem [shape: f32[1,128], index: 2, kind: input, shape index: {}]
  %s3 = inlined_call_operand.hbm [shape: f32[2048,128], index: 3, kind: output, shape index: {}]
  %s4 = sld [smem:[#allocation0]]
  $region53: #{tpu_custom_call.1} parent=0
    _
  %s6 = ssub.s32 1, %s4
  %s7 = scalar_select 0, %s6, %s4
  $region1: #{tpu_custom_call.1} parent=0
    #allocation2 [shape = 'u8[524288]{0}', space=vmem, size = 0x80000, scoped, tag = 'input window, operand 0']
    #allocation3 [shape = 's32[2]{0}', space=sflag, size = 0x8, scoped, tag = 'scoped memory for tpu_custom_call.1']
    #allocation4 [shape = 's32[2]{0}', space=sflag, size = 0x8, scoped, tag = 'scoped memory for tpu_custom_call.1']
    #allocation5 [shape = 'u8[65536]{0}', space=vmem, size = 0x10000, scoped, tag = 'input window, operand 1, single buffered']
    #allocation6 [shape = 's32[1]{0}', space=sflag, size = 0x4, scoped, tag = 'scoped memory for tpu_custom_call.1']
    #allocation7 [shape = 'u8[524288]{0}', space=vmem, size = 0x80000, scoped, tag = 'output window, operand 0']
    %8 = vsyncpa [#allocation3], 0
    %s9 = scalar_lea.sflag [#allocation3], 1
    %10 = vsyncpa %s9, 0
    %11 = vsyncpa [#allocation6], 0
    %12 = vsyncpa [#allocation4], 0
    %s13 = scalar_lea.sflag [#allocation4], 1
    %14 = vsyncpa %s13, 0
    loop: start=0, step=1, limit=6
    $region2: #{tpu_custom_call.1} parent=1 // loop_pre_header
      _
    $region3: #{tpu_custom_call.1} parent=1 // loop_header
      %s16 = sphi 0, %s20
      %p17 = scmp.ge.s32.totalorder %s16, 6
      %s26 = sphi 0, %s28
      %s29 = sphi 0, %s26
      %s30 = sphi 0, %s29
      %s46 = sphi 0, %s30
      %s50 = sphi 0, %s50
      %s52 = sphi 0, %s50
      %s53 = sphi 0, %s52
      %s67 = sphi 0, %s53
      %s71 = sphi 0, %s71
      %s73 = sphi 0, %s71
      %s74 = sphi 0, %s73
      %s88 = sphi 0, %s74
      %s94 = sphi 0, %s96
      %s97 = sphi 0, %s94
      %s98 = sphi 0, %s97
      %s114 = sphi 0, %s98
    $region4: #{tpu_custom_call.1} parent=1 // loop_header_branch
      %19 = sbr.rel (%p17) target = $region8
    $region5: #{tpu_custom_call.1} parent=1 // loop_body
      %s21 = ssub.s32 %s16, 1
      %s22 = ssub.s32 %s16, 2
      %s23 = sadd.s32 %s16, 1
      %s24 = ssub.s32 %s16, %s23
      %p25 = scmp.eq.s32.totalorder %s24, 0
      %s27 = sadd.s32 %s26, 1
      %s28 = scalar_select %p25, %s26, %s27
      %p31 = pneg %p25
      %p32 = scmp.eq.s32.totalorder %s16, 3
      %p33 = por %p31, %p32
      %p34 = scmp.ne.s32.totalorder %s26, %s29
      %p35 = scmp.eq.s32.totalorder %s16, 0
      %p36 = por %p34, %p35
      %p37 = scmp.ne.s32.totalorder %s26, %s29
      %p38 = scmp.eq.s32.totalorder %s21, 3
      %p39 = por %p37, %p38
      %p40 = scmp.ne.s32.totalorder %s29, %s30
      %p41 = scmp.eq.s32.totalorder %s21, 0
      %p42 = por %p40, %p41
      %p43 = scmp.ne.s32.totalorder %s29, %s30
      %p44 = scmp.eq.s32.totalorder %s22, 3
      %p45 = por %p43, %p44
      %p47 = scmp.ne.s32.totalorder %s30, %s46
      %p48 = scmp.eq.s32.totalorder %s22, 0
      %p49 = por %p47, %p48
      %s51 = sadd.s32 %s50, 1
      %p54 = scmp.eq.s32.totalorder %s16, 3
      %p55 = scmp.ne.s32.totalorder %s50, %s52
      %p56 = scmp.eq.s32.totalorder %s16, 0
      %p57 = por %p55, %p56
      %p58 = scmp.ne.s32.totalorder %s50, %s52
      %p59 = scmp.eq.s32.totalorder %s21, 3
      %p60 = por %p58, %p59
      %p61 = scmp.ne.s32.totalorder %s52, %s53
      %p62 = scmp.eq.s32.totalorder %s21, 0
      %p63 = por %p61, %p62
      %p64 = scmp.ne.s32.totalorder %s52, %s53
      %p65 = scmp.eq.s32.totalorder %s22, 3
      %p66 = por %p64, %p65
      %p68 = scmp.ne.s32.totalorder %s53, %s67
      %p69 = scmp.eq.s32.totalorder %s22, 0
      %p70 = por %p68, %p69
      %s72 = sadd.s32 %s71, 1
      %p75 = scmp.eq.s32.totalorder %s16, 3
      %p76 = scmp.ne.s32.totalorder %s71, %s73
      %p77 = scmp.eq.s32.totalorder %s16, 0
      %p78 = por %p76, %p77
      %p79 = scmp.ne.s32.totalorder %s71, %s73
      %p80 = scmp.eq.s32.totalorder %s21, 3
      %p81 = por %p79, %p80
      %p82 = scmp.ne.s32.totalorder %s73, %s74
      %p83 = scmp.eq.s32.totalorder %s21, 0
      %p84 = por %p82, %p83
      %p85 = scmp.ne.s32.totalorder %s73, %s74
      %p86 = scmp.eq.s32.totalorder %s22, 3
      %p87 = por %p85, %p86
      %p89 = scmp.ne.s32.totalorder %s74, %s88
      %p90 = scmp.eq.s32.totalorder %s22, 0
      %p91 = por %p89, %p90
      %s92 = ssub.s32 %s16, %s23
      %p93 = scmp.eq.s32.totalorder %s92, 0
      %s95 = sadd.s32 %s94, 1
      %s96 = scalar_select %p93, %s94, %s95
      %p99 = pneg %p93
      %p100 = scmp.eq.s32.totalorder %s16, 3
      %p101 = por %p99, %p100
      %p102 = scmp.ne.s32.totalorder %s94, %s97
      %p103 = scmp.eq.s32.totalorder %s16, 0
      %p104 = por %p102, %p103
      %p105 = scmp.ne.s32.totalorder %s94, %s97
      %p106 = scmp.eq.s32.totalorder %s21, 3
      %p107 = por %p105, %p106
      %p108 = scmp.ne.s32.totalorder %s97, %s98
      %p109 = scmp.eq.s32.totalorder %s21, 0
      %p110 = por %p108, %p109
      %p111 = scmp.ne.s32.totalorder %s97, %s98
      %p112 = scmp.eq.s32.totalorder %s22, 3
      %p113 = por %p111, %p112
      %p115 = scmp.ne.s32.totalorder %s98, %s114
      %p116 = scmp.eq.s32.totalorder %s22, 0
      %p117 = por %p115, %p116
      %p118 = scmp.le.s32.totalorder 1, %s16
      %p119 = scmp.lt.s32.totalorder %s16, 5
      %p120 = pnand %p118, %p119
      %p121 = pneg %p120
      // Predicated region
      $region9: #{tpu_custom_call.1} parent=5 // pred_check
        _
      $region10: #{tpu_custom_call.1} parent=5 // pred_check_branch
        %123 = sbr.rel (%p120) target = $region12
      $region11: #{tpu_custom_call.1} parent=5 // pred_region
        %s124 = ssub.s32 %s16, 1
        // Predicated region
        $region13: #{tpu_custom_call.1} parent=11 // pred_check
          %p125 = pneg %p63
        $region14: #{tpu_custom_call.1} parent=11 // pred_check_branch
          %127 = sbr.rel (%p125) target = $region16
        $region15: #{tpu_custom_call.1} parent=11 // pred_region
          %129 = vsyncadd [#allocation6], 0
          %s130 = sshll.u32 %s1, 4
          %s131 = int_to_ptr.hbm [resolvable:$true] %s130
          %s132 = sshll.u32 [#allocation5], 4
          %s133 = int_to_ptr.vmem [resolvable:$true] %s132
          %138 = dma.hbm_to_vmem [thread:$0]  %s131, 2048, %s133, [#allocation6], 128, 128, 8
        $region16: #{tpu_custom_call.1} parent=11 // pred_fallthru
          _
        // Predicated region
        $region17: #{tpu_custom_call.1} parent=11 // pred_check
          %p139 = pneg %p84
        $region18: #{tpu_custom_call.1} parent=11 // pred_check_branch
          %141 = sbr.rel (%p139) target = $region20
        $region19: #{tpu_custom_call.1} parent=11 // pred_region
          _
        $region20: #{tpu_custom_call.1} parent=11 // pred_fallthru
          _
      $region12: #{tpu_custom_call.1} parent=5 // pred_fallthru
        _
      %p142 = scmp.lt.s32.totalorder %s16, 4
      // Predicated region
      $region21: #{tpu_custom_call.1} parent=5 // pred_check
        %p143 = pneg %p142
      $region22: #{tpu_custom_call.1} parent=5 // pred_check_branch
        %145 = sbr.rel (%p143) target = $region24
      $region23: #{tpu_custom_call.1} parent=5 // pred_region
        // Predicated region
        $region25: #{tpu_custom_call.1} parent=23 // pred_check
          %p146 = pneg %p36
        $region26: #{tpu_custom_call.1} parent=23 // pred_check_branch
          %148 = sbr.rel (%p146) target = $region28
        $region27: #{tpu_custom_call.1} parent=23 // pred_region
          %s149 = sand.u32 %s26, 1
          %s150 = scalar_lea.sflag [#allocation3], %s149
          %s151 = sand.u32 %s26, 1
          %s152 = smul.addr %s151, 512
          %s153 = scalar_lea.vmem [#allocation2], %s152
          %s154 = smul.u32 64, %s16
          %156 = vsyncadd %s150, 0
          %s157 = smul.addr %s154, 8
          %s158 = scalar_lea.hbm %s0, %s157
          %s159 = sshll.u32 %s158, 4
          %s160 = int_to_ptr.hbm [resolvable:$true] %s159
          %s161 = sshll.u32 %s153, 4
          %s162 = int_to_ptr.vmem [resolvable:$true] %s161
          %167 = dma.hbm_to_vmem [thread:$0]  %s160, 8192, %s162, %s150, 128, 128, 8
        $region28: #{tpu_custom_call.1} parent=23 // pred_fallthru
          _
      $region24: #{tpu_custom_call.1} parent=5 // pred_fallthru
        _
      %p168 = scmp.le.s32.totalorder 1, %s16
      %p169 = scmp.lt.s32.totalorder %s16, 5
      %p170 = pnand %p168, %p169
      %p171 = pneg %p170
      // Predicated region
      $region29: #{tpu_custom_call.1} parent=5 // pred_check
        _
      $region30: #{tpu_custom_call.1} parent=5 // pred_check_branch
        %173 = sbr.rel (%p170) target = $region32
      $region31: #{tpu_custom_call.1} parent=5 // pred_region
        %s174 = ssub.s32 %s16, 1
        %s175 = sand.u32 %s29, 1
        %s176 = scalar_lea.sflag [#allocation3], %s175
        %s177 = sand.u32 %s29, 1
        %s178 = smul.addr %s177, 512
        %s179 = scalar_lea.vmem [#allocation2], %s178
        // Predicated region
        $region33: #{tpu_custom_call.1} parent=31 // pred_check
          %p180 = pneg %p42
        $region34: #{tpu_custom_call.1} parent=31 // pred_check_branch
          %182 = sbr.rel (%p180) target = $region36
        $region35: #{tpu_custom_call.1} parent=31 // pred_region
          %184 = dma.done %s176, 8192
        $region36: #{tpu_custom_call.1} parent=31 // pred_fallthru
          _
        // Predicated region
        $region37: #{tpu_custom_call.1} parent=31 // pred_check
          %p185 = pneg %p63
        $region38: #{tpu_custom_call.1} parent=31 // pred_check_branch
          %187 = sbr.rel (%p185) target = $region40
        $region39: #{tpu_custom_call.1} parent=31 // pred_region
          %189 = dma.done [#allocation6], 2048
        $region40: #{tpu_custom_call.1} parent=31 // pred_fallthru
          _
        %s190 = sand.u32 %s29, 1
        %s191 = scalar_lea.sflag [#allocation3], %s190
        %s192 = sand.u32 %s29, 1
        %s193 = smul.addr %s192, 512
        %s194 = scalar_lea.vmem [#allocation2], %s193
        %p195 = pneg %p42
        %p196 = pneg %p39
        %p197 = pneg %p63
        %p198 = pneg %p60
        %p199 = pneg %p84
        %p200 = pneg %p81
        %p201 = pneg %p110
        %p202 = pneg %p107
        %s203 = sand.u32 %s97, 1
        %s204 = scalar_lea.sflag [#allocation4], %s203
        %s205 = sand.u32 %s97, 1
        %s206 = smul.addr %s205, 512
        %s207 = scalar_lea.vmem [#allocation7], %s206
        %s208 = smul.u32 64, %s21
        %s209 = smul.u32 64, %s21
        %v210 = vld [vmem:[%s179] sm:$0xff]
        %v211 = vld [vmem:[%s179 + $0x8] sm:$0xff]
        %v212 = vld [vmem:[%s179 + $0x10] sm:$0xff]
        %v213 = vld [vmem:[%s179 + $0x18] sm:$0xff]
        %v214 = vld [vmem:[%s179 + $0x20] sm:$0xff]
        %v215 = vld [vmem:[%s179 + $0x28] sm:$0xff]
        %v216 = vld [vmem:[%s179 + $0x30] sm:$0xff]
        %v217 = vld [vmem:[%s179 + $0x38] sm:$0xff]
        %v218 = vld [vmem:[%s179 + $0x40] sm:$0xff]
        %v219 = vld [vmem:[%s179 + $0x48] sm:$0xff]
        %v220 = vld [vmem:[%s179 + $0x50] sm:$0xff]
        %v221 = vld [vmem:[%s179 + $0x58] sm:$0xff]
        %v222 = vld [vmem:[%s179 + $0x60] sm:$0xff]
        %v223 = vld [vmem:[%s179 + $0x68] sm:$0xff]
        %v224 = vld [vmem:[%s179 + $0x70] sm:$0xff]
        %v225 = vld [vmem:[%s179 + $0x78] sm:$0xff]
        %v226 = vld [vmem:[%s179 + $0x80] sm:$0xff]
        %v227 = vld [vmem:[%s179 + $0x88] sm:$0xff]
        %v228 = vld [vmem:[%s179 + $0x90] sm:$0xff]
        %v229 = vld [vmem:[%s179 + $0x98] sm:$0xff]
        %v230 = vld [vmem:[%s179 + $0xa0] sm:$0xff]
        %v231 = vld [vmem:[%s179 + $0xa8] sm:$0xff]
        %v232 = vld [vmem:[%s179 + $0xb0] sm:$0xff]
        %v233 = vld [vmem:[%s179 + $0xb8] sm:$0xff]
        %v234 = vld [vmem:[%s179 + $0xc0] sm:$0xff]
        %v235 = vld [vmem:[%s179 + $0xc8] sm:$0xff]
        %v236 = vld [vmem:[%s179 + $0xd0] sm:$0xff]
        %v237 = vld [vmem:[%s179 + $0xd8] sm:$0xff]
        %v238 = vld [vmem:[%s179 + $0xe0] sm:$0xff]
        %v239 = vld [vmem:[%s179 + $0xe8] sm:$0xff]
        %v240 = vld [vmem:[%s179 + $0xf0] sm:$0xff]
        %v241 = vld [vmem:[%s179 + $0xf8] sm:$0xff]
        %v242 = vld [vmem:[%s179 + $0x100] sm:$0xff]
        %v243 = vld [vmem:[%s179 + $0x108] sm:$0xff]
        %v244 = vld [vmem:[%s179 + $0x110] sm:$0xff]
        %v245 = vld [vmem:[%s179 + $0x118] sm:$0xff]
        %v246 = vld [vmem:[%s179 + $0x120] sm:$0xff]
        %v247 = vld [vmem:[%s179 + $0x128] sm:$0xff]
        %v248 = vld [vmem:[%s179 + $0x130] sm:$0xff]
        %v249 = vld [vmem:[%s179 + $0x138] sm:$0xff]
        %v250 = vld [vmem:[%s179 + $0x140] sm:$0xff]
        %v251 = vld [vmem:[%s179 + $0x148] sm:$0xff]
        %v252 = vld [vmem:[%s179 + $0x150] sm:$0xff]
        %v253 = vld [vmem:[%s179 + $0x158] sm:$0xff]
        %v254 = vld [vmem:[%s179 + $0x160] sm:$0xff]
        %v255 = vld [vmem:[%s179 + $0x168] sm:$0xff]
        %v256 = vld [vmem:[%s179 + $0x170] sm:$0xff]
        %v257 = vld [vmem:[%s179 + $0x178] sm:$0xff]
        %v258 = vld [vmem:[%s179 + $0x180] sm:$0xff]
        %v259 = vld [vmem:[%s179 + $0x188] sm:$0xff]
        %v260 = vld [vmem:[%s179 + $0x190] sm:$0xff]
        %v261 = vld [vmem:[%s179 + $0x198] sm:$0xff]
        %v262 = vld [vmem:[%s179 + $0x1a0] sm:$0xff]
        %v263 = vld [vmem:[%s179 + $0x1a8] sm:$0xff]
        %v264 = vld [vmem:[%s179 + $0x1b0] sm:$0xff]
        %v265 = vld [vmem:[%s179 + $0x1b8] sm:$0xff]
        %v266 = vld [vmem:[%s179 + $0x1c0] sm:$0xff]
        %v267 = vld [vmem:[%s179 + $0x1c8] sm:$0xff]
        %v268 = vld [vmem:[%s179 + $0x1d0] sm:$0xff]
        %v269 = vld [vmem:[%s179 + $0x1d8] sm:$0xff]
        %v270 = vld [vmem:[%s179 + $0x1e0] sm:$0xff]
        %v271 = vld [vmem:[%s179 + $0x1e8] sm:$0xff]
        %v272 = vld [vmem:[%s179 + $0x1f0] sm:$0xff]
        %v273 = vld [vmem:[%s179 + $0x1f8] sm:$0xff]
        %v274 = vld [vmem:[#allocation5] sm:$0xff]
        %v275 = vld [vmem:[#allocation5 + $0x8] sm:$0xff]
        %v276 = vld [vmem:[#allocation5 + $0x10] sm:$0xff]
        %v277 = vld [vmem:[#allocation5 + $0x18] sm:$0xff]
        %v278 = vld [vmem:[#allocation5 + $0x20] sm:$0xff]
        %v279 = vld [vmem:[#allocation5 + $0x28] sm:$0xff]
        %v280 = vld [vmem:[#allocation5 + $0x30] sm:$0xff]
        %v281 = vld [vmem:[#allocation5 + $0x38] sm:$0xff]
        %v282 = vld [vmem:[#allocation5 + $0x40] sm:$0xff]
        %v283 = vld [vmem:[#allocation5 + $0x48] sm:$0xff]
        %v284 = vld [vmem:[#allocation5 + $0x50] sm:$0xff]
        %v285 = vld [vmem:[#allocation5 + $0x58] sm:$0xff]
        %v286 = vld [vmem:[#allocation5 + $0x60] sm:$0xff]
        %v287 = vld [vmem:[#allocation5 + $0x68] sm:$0xff]
        %v288 = vld [vmem:[#allocation5 + $0x70] sm:$0xff]
        %v289 = vld [vmem:[#allocation5 + $0x78] sm:$0xff]
        %v290 = vmul.f32 %v210, %v210
        %v291 = vmul.f32 %v211, %v211
        %v292 = vmul.f32 %v212, %v212
        %v293 = vmul.f32 %v213, %v213
        %v294 = vmul.f32 %v214, %v214
        %v295 = vmul.f32 %v215, %v215
        %v296 = vmul.f32 %v216, %v216
        %v297 = vmul.f32 %v217, %v217
        %v298 = vmul.f32 %v218, %v218
        %v299 = vmul.f32 %v219, %v219
        %v300 = vmul.f32 %v220, %v220
        %v301 = vmul.f32 %v221, %v221
        %v302 = vmul.f32 %v222, %v222
        %v303 = vmul.f32 %v223, %v223
        %v304 = vmul.f32 %v224, %v224
        %v305 = vmul.f32 %v225, %v225
        %v306 = vmul.f32 %v226, %v226
        %v307 = vmul.f32 %v227, %v227
        %v308 = vmul.f32 %v228, %v228
        %v309 = vmul.f32 %v229, %v229
        %v310 = vmul.f32 %v230, %v230
        %v311 = vmul.f32 %v231, %v231
        %v312 = vmul.f32 %v232, %v232
        %v313 = vmul.f32 %v233, %v233
        %v314 = vmul.f32 %v234, %v234
        %v315 = vmul.f32 %v235, %v235
        %v316 = vmul.f32 %v236, %v236
        %v317 = vmul.f32 %v237, %v237
        %v318 = vmul.f32 %v238, %v238
        %v319 = vmul.f32 %v239, %v239
        %v320 = vmul.f32 %v240, %v240
        %v321 = vmul.f32 %v241, %v241
        %v322 = vmul.f32 %v242, %v242
        %v323 = vmul.f32 %v243, %v243
        %v324 = vmul.f32 %v244, %v244
        %v325 = vmul.f32 %v245, %v245
        %v326 = vmul.f32 %v246, %v246
        %v327 = vmul.f32 %v247, %v247
        %v328 = vmul.f32 %v248, %v248
        %v329 = vmul.f32 %v249, %v249
        %v330 = vmul.f32 %v250, %v250
        %v331 = vmul.f32 %v251, %v251
        %v332 = vmul.f32 %v252, %v252
        %v333 = vmul.f32 %v253, %v253
        %v334 = vmul.f32 %v254, %v254
        %v335 = vmul.f32 %v255, %v255
        %v336 = vmul.f32 %v256, %v256
        %v337 = vmul.f32 %v257, %v257
        %v338 = vmul.f32 %v258, %v258
        %v339 = vmul.f32 %v259, %v259
        %v340 = vmul.f32 %v260, %v260
        %v341 = vmul.f32 %v261, %v261
        %v342 = vmul.f32 %v262, %v262
        %v343 = vmul.f32 %v263, %v263
        %v344 = vmul.f32 %v264, %v264
        %v345 = vmul.f32 %v265, %v265
        %v346 = vmul.f32 %v266, %v266
        %v347 = vmul.f32 %v267, %v267
        %v348 = vmul.f32 %v268, %v268
        %v349 = vmul.f32 %v269, %v269
        %v350 = vmul.f32 %v270, %v270
        %v351 = vmul.f32 %v271, %v271
        %v352 = vmul.f32 %v272, %v272
        %v353 = vmul.f32 %v273, %v273
        %354 = vadd.xlane.f32.xlu0 %v290
        %v355 = vpop.xlane.xlu0 %354
        %356 = vadd.xlane.f32.xlu0 %v291
        %v357 = vpop.xlane.xlu0 %356
        %358 = vadd.xlane.f32.xlu0 %v292
        %v359 = vpop.xlane.xlu0 %358
        %360 = vadd.xlane.f32.xlu0 %v293
        %v361 = vpop.xlane.xlu0 %360
        %362 = vadd.xlane.f32.xlu0 %v294
        %v363 = vpop.xlane.xlu0 %362
        %364 = vadd.xlane.f32.xlu0 %v295
        %v365 = vpop.xlane.xlu0 %364
        %366 = vadd.xlane.f32.xlu0 %v296
        %v367 = vpop.xlane.xlu0 %366
        %368 = vadd.xlane.f32.xlu0 %v297
        %v369 = vpop.xlane.xlu0 %368
        %370 = vadd.xlane.f32.xlu0 %v298
        %v371 = vpop.xlane.xlu0 %370
        %372 = vadd.xlane.f32.xlu0 %v299
        %v373 = vpop.xlane.xlu0 %372
        %374 = vadd.xlane.f32.xlu0 %v300
        %v375 = vpop.xlane.xlu0 %374
        %376 = vadd.xlane.f32.xlu0 %v301
        %v377 = vpop.xlane.xlu0 %376
        %378 = vadd.xlane.f32.xlu0 %v302
        %v379 = vpop.xlane.xlu0 %378
        %380 = vadd.xlane.f32.xlu0 %v303
        %v381 = vpop.xlane.xlu0 %380
        %382 = vadd.xlane.f32.xlu0 %v304
        %v383 = vpop.xlane.xlu0 %382
        %384 = vadd.xlane.f32.xlu0 %v305
        %v385 = vpop.xlane.xlu0 %384
        %386 = vadd.xlane.f32.xlu0 %v306
        %v387 = vpop.xlane.xlu0 %386
        %388 = vadd.xlane.f32.xlu0 %v307
        %v389 = vpop.xlane.xlu0 %388
        %390 = vadd.xlane.f32.xlu0 %v308
        %v391 = vpop.xlane.xlu0 %390
        %392 = vadd.xlane.f32.xlu0 %v309
        %v393 = vpop.xlane.xlu0 %392
        %394 = vadd.xlane.f32.xlu0 %v310
        %v395 = vpop.xlane.xlu0 %394
        %396 = vadd.xlane.f32.xlu0 %v311
        %v397 = vpop.xlane.xlu0 %396
        %398 = vadd.xlane.f32.xlu0 %v312
        %v399 = vpop.xlane.xlu0 %398
        %400 = vadd.xlane.f32.xlu0 %v313
        %v401 = vpop.xlane.xlu0 %400
        %402 = vadd.xlane.f32.xlu0 %v314
        %v403 = vpop.xlane.xlu0 %402
        %404 = vadd.xlane.f32.xlu0 %v315
        %v405 = vpop.xlane.xlu0 %404
        %406 = vadd.xlane.f32.xlu0 %v316
        %v407 = vpop.xlane.xlu0 %406
        %408 = vadd.xlane.f32.xlu0 %v317
        %v409 = vpop.xlane.xlu0 %408
        %410 = vadd.xlane.f32.xlu0 %v318
        %v411 = vpop.xlane.xlu0 %410
        %412 = vadd.xlane.f32.xlu0 %v319
        %v413 = vpop.xlane.xlu0 %412
        %414 = vadd.xlane.f32.xlu0 %v320
        %v415 = vpop.xlane.xlu0 %414
        %416 = vadd.xlane.f32.xlu0 %v321
        %v417 = vpop.xlane.xlu0 %416
        %418 = vadd.xlane.f32.xlu0 %v322
        %v419 = vpop.xlane.xlu0 %418
        %420 = vadd.xlane.f32.xlu0 %v323
        %v421 = vpop.xlane.xlu0 %420
        %422 = vadd.xlane.f32.xlu0 %v324
        %v423 = vpop.xlane.xlu0 %422
        %424 = vadd.xlane.f32.xlu0 %v325
        %v425 = vpop.xlane.xlu0 %424
        %426 = vadd.xlane.f32.xlu0 %v326
        %v427 = vpop.xlane.xlu0 %426
        %428 = vadd.xlane.f32.xlu0 %v327
        %v429 = vpop.xlane.xlu0 %428
        %430 = vadd.xlane.f32.xlu0 %v328
        %v431 = vpop.xlane.xlu0 %430
        %432 = vadd.xlane.f32.xlu0 %v329
        %v433 = vpop.xlane.xlu0 %432
        %434 = vadd.xlane.f32.xlu0 %v330
        %v435 = vpop.xlane.xlu0 %434
        %436 = vadd.xlane.f32.xlu0 %v331
        %v437 = vpop.xlane.xlu0 %436
        %438 = vadd.xlane.f32.xlu0 %v332
        %v439 = vpop.xlane.xlu0 %438
        %440 = vadd.xlane.f32.xlu0 %v333
        %v441 = vpop.xlane.xlu0 %440
        %442 = vadd.xlane.f32.xlu0 %v334
        %v443 = vpop.xlane.xlu0 %442
        %444 = vadd.xlane.f32.xlu0 %v335
        %v445 = vpop.xlane.xlu0 %444
        %446 = vadd.xlane.f32.xlu0 %v336
        %v447 = vpop.xlane.xlu0 %446
        %448 = vadd.xlane.f32.xlu0 %v337
        %v449 = vpop.xlane.xlu0 %448
        %450 = vadd.xlane.f32.xlu0 %v338
        %v451 = vpop.xlane.xlu0 %450
        %452 = vadd.xlane.f32.xlu0 %v339
        %v453 = vpop.xlane.xlu0 %452
        %454 = vadd.xlane.f32.xlu0 %v340
        %v455 = vpop.xlane.xlu0 %454
        %456 = vadd.xlane.f32.xlu0 %v341
        %v457 = vpop.xlane.xlu0 %456
        %458 = vadd.xlane.f32.xlu0 %v342
        %v459 = vpop.xlane.xlu0 %458
        %460 = vadd.xlane.f32.xlu0 %v343
        %v461 = vpop.xlane.xlu0 %460
        %462 = vadd.xlane.f32.xlu0 %v344
        %v463 = vpop.xlane.xlu0 %462
        %464 = vadd.xlane.f32.xlu0 %v345
        %v465 = vpop.xlane.xlu0 %464
        %466 = vadd.xlane.f32.xlu0 %v346
        %v467 = vpop.xlane.xlu0 %466
        %468 = vadd.xlane.f32.xlu0 %v347
        %v469 = vpop.xlane.xlu0 %468
        %470 = vadd.xlane.f32.xlu0 %v348
        %v471 = vpop.xlane.xlu0 %470
        %472 = vadd.xlane.f32.xlu0 %v349
        %v473 = vpop.xlane.xlu0 %472
        %474 = vadd.xlane.f32.xlu0 %v350
        %v475 = vpop.xlane.xlu0 %474
        %476 = vadd.xlane.f32.xlu0 %v351
        %v477 = vpop.xlane.xlu0 %476
        %478 = vadd.xlane.f32.xlu0 %v352
        %v479 = vpop.xlane.xlu0 %478
        %480 = vadd.xlane.f32.xlu0 %v353
        %v481 = vpop.xlane.xlu0 %480
        %482 = vmatpush.xpose.msra.mxu0 %v289
        %483 = vmatpush.xpose.msra.mxu0 %v288
        %484 = vmatpush.xpose.msra.mxu0 %v287
        %485 = vmatpush.xpose.msra.mxu0 %v286
        %486 = vmatpush.xpose.msra.mxu0 %v285
        %487 = vmatpush.xpose.msra.mxu0 %v284
        %488 = vmatpush.xpose.msra.mxu0 %v283
        %489 = vmatpush.xpose.msra.mxu0 %v282
        %490 = vmatpush.xpose.msra.mxu0 %v281
        %491 = vmatpush.xpose.msra.mxu0 %v280
        %492 = vmatpush.xpose.msra.mxu0 %v279
        %493 = vmatpush.xpose.msra.mxu0 %v278
        %494 = vmatpush.xpose.msra.mxu0 %v277
        %495 = vmatpush.xpose.msra.mxu0 %v276
        %496 = vmatpush.xpose.msra.mxu0 %v275
        %497 = vmatpush.xpose.msra.mxu0 %v274
        %498 = vmatmul.f32.gmra.mxu0 %v210
        %v499 = vpop.f32.mrf.mxu0
        %v500 = vadd.f32 0.0, %v499
        %501 = vmatmul.f32.gmra.mxu0 %v211
        %v502 = vpop.f32.mrf.mxu0
        %v503 = vadd.f32 0.0, %v502
        %504 = vmatmul.f32.gmra.mxu0 %v212
        %v505 = vpop.f32.mrf.mxu0
        %v506 = vadd.f32 0.0, %v505
        %507 = vmatmul.f32.gmra.mxu0 %v213
        %v508 = vpop.f32.mrf.mxu0
        %v509 = vadd.f32 0.0, %v508
        %510 = vmatmul.f32.gmra.mxu0 %v214
        %v511 = vpop.f32.mrf.mxu0
        %v512 = vadd.f32 0.0, %v511
        %513 = vmatmul.f32.gmra.mxu0 %v215
        %v514 = vpop.f32.mrf.mxu0
        %v515 = vadd.f32 0.0, %v514
        %516 = vmatmul.f32.gmra.mxu0 %v216
        %v517 = vpop.f32.mrf.mxu0
        %v518 = vadd.f32 0.0, %v517
        %519 = vmatmul.f32.gmra.mxu0 %v217
        %v520 = vpop.f32.mrf.mxu0
        %v521 = vadd.f32 0.0, %v520
        %522 = vmatmul.f32.gmra.mxu0 %v218
        %v523 = vpop.f32.mrf.mxu0
        %v524 = vadd.f32 0.0, %v523
        %525 = vmatmul.f32.gmra.mxu0 %v219
        %v526 = vpop.f32.mrf.mxu0
        %v527 = vadd.f32 0.0, %v526
        %528 = vmatmul.f32.gmra.mxu0 %v220
        %v529 = vpop.f32.mrf.mxu0
        %v530 = vadd.f32 0.0, %v529
        %531 = vmatmul.f32.gmra.mxu0 %v221
        %v532 = vpop.f32.mrf.mxu0
        %v533 = vadd.f32 0.0, %v532
        %534 = vmatmul.f32.gmra.mxu0 %v222
        %v535 = vpop.f32.mrf.mxu0
        %v536 = vadd.f32 0.0, %v535
        %537 = vmatmul.f32.gmra.mxu0 %v223
        %v538 = vpop.f32.mrf.mxu0
        %v539 = vadd.f32 0.0, %v538
        %540 = vmatmul.f32.gmra.mxu0 %v224
        %v541 = vpop.f32.mrf.mxu0
        %v542 = vadd.f32 0.0, %v541
        %543 = vmatmul.f32.gmra.mxu0 %v225
        %v544 = vpop.f32.mrf.mxu0
        %v545 = vadd.f32 0.0, %v544
        %546 = vmatmul.f32.gmra.mxu0 %v226
        %v547 = vpop.f32.mrf.mxu0
        %v548 = vadd.f32 0.0, %v547
        %549 = vmatmul.f32.gmra.mxu0 %v227
        %v550 = vpop.f32.mrf.mxu0
        %v551 = vadd.f32 0.0, %v550
        %552 = vmatmul.f32.gmra.mxu0 %v228
        %v553 = vpop.f32.mrf.mxu0
        %v554 = vadd.f32 0.0, %v553
        %555 = vmatmul.f32.gmra.mxu0 %v229
        %v556 = vpop.f32.mrf.mxu0
        %v557 = vadd.f32 0.0, %v556
        %558 = vmatmul.f32.gmra.mxu0 %v230
        %v559 = vpop.f32.mrf.mxu0
        %v560 = vadd.f32 0.0, %v559
        %561 = vmatmul.f32.gmra.mxu0 %v231
        %v562 = vpop.f32.mrf.mxu0
        %v563 = vadd.f32 0.0, %v562
        %564 = vmatmul.f32.gmra.mxu0 %v232
        %v565 = vpop.f32.mrf.mxu0
        %v566 = vadd.f32 0.0, %v565
        %567 = vmatmul.f32.gmra.mxu0 %v233
        %v568 = vpop.f32.mrf.mxu0
        %v569 = vadd.f32 0.0, %v568
        %570 = vmatmul.f32.gmra.mxu0 %v234
        %v571 = vpop.f32.mrf.mxu0
        %v572 = vadd.f32 0.0, %v571
        %573 = vmatmul.f32.gmra.mxu0 %v235
        %v574 = vpop.f32.mrf.mxu0
        %v575 = vadd.f32 0.0, %v574
        %576 = vmatmul.f32.gmra.mxu0 %v236
        %v577 = vpop.f32.mrf.mxu0
        %v578 = vadd.f32 0.0, %v577
        %579 = vmatmul.f32.gmra.mxu0 %v237
        %v580 = vpop.f32.mrf.mxu0
        %v581 = vadd.f32 0.0, %v580
        %582 = vmatmul.f32.gmra.mxu0 %v238
        %v583 = vpop.f32.mrf.mxu0
        %v584 = vadd.f32 0.0, %v583
        %585 = vmatmul.f32.gmra.mxu0 %v239
        %v586 = vpop.f32.mrf.mxu0
        %v587 = vadd.f32 0.0, %v586
        %588 = vmatmul.f32.gmra.mxu0 %v240
        %v589 = vpop.f32.mrf.mxu0
        %v590 = vadd.f32 0.0, %v589
        %591 = vmatmul.f32.gmra.mxu0 %v241
        %v592 = vpop.f32.mrf.mxu0
        %v593 = vadd.f32 0.0, %v592
        %594 = vmatmul.f32.gmra.mxu0 %v242
        %v595 = vpop.f32.mrf.mxu0
        %v596 = vadd.f32 0.0, %v595
        %597 = vmatmul.f32.gmra.mxu0 %v243
        %v598 = vpop.f32.mrf.mxu0
        %v599 = vadd.f32 0.0, %v598
        %600 = vmatmul.f32.gmra.mxu0 %v244
        %v601 = vpop.f32.mrf.mxu0
        %v602 = vadd.f32 0.0, %v601
        %603 = vmatmul.f32.gmra.mxu0 %v245
        %v604 = vpop.f32.mrf.mxu0
        %v605 = vadd.f32 0.0, %v604
        %606 = vmatmul.f32.gmra.mxu0 %v246
        %v607 = vpop.f32.mrf.mxu0
        %v608 = vadd.f32 0.0, %v607
        %609 = vmatmul.f32.gmra.mxu0 %v247
        %v610 = vpop.f32.mrf.mxu0
        %v611 = vadd.f32 0.0, %v610
        %612 = vmatmul.f32.gmra.mxu0 %v248
        %v613 = vpop.f32.mrf.mxu0
        %v614 = vadd.f32 0.0, %v613
        %615 = vmatmul.f32.gmra.mxu0 %v249
        %v616 = vpop.f32.mrf.mxu0
        %v617 = vadd.f32 0.0, %v616
        %618 = vmatmul.f32.gmra.mxu0 %v250
        %v619 = vpop.f32.mrf.mxu0
        %v620 = vadd.f32 0.0, %v619
        %621 = vmatmul.f32.gmra.mxu0 %v251
        %v622 = vpop.f32.mrf.mxu0
        %v623 = vadd.f32 0.0, %v622
        %624 = vmatmul.f32.gmra.mxu0 %v252
        %v625 = vpop.f32.mrf.mxu0
        %v626 = vadd.f32 0.0, %v625
        %627 = vmatmul.f32.gmra.mxu0 %v253
        %v628 = vpop.f32.mrf.mxu0
        %v629 = vadd.f32 0.0, %v628
        %630 = vmatmul.f32.gmra.mxu0 %v254
        %v631 = vpop.f32.mrf.mxu0
        %v632 = vadd.f32 0.0, %v631
        %633 = vmatmul.f32.gmra.mxu0 %v255
        %v634 = vpop.f32.mrf.mxu0
        %v635 = vadd.f32 0.0, %v634
        %636 = vmatmul.f32.gmra.mxu0 %v256
        %v637 = vpop.f32.mrf.mxu0
        %v638 = vadd.f32 0.0, %v637
        %639 = vmatmul.f32.gmra.mxu0 %v257
        %v640 = vpop.f32.mrf.mxu0
        %v641 = vadd.f32 0.0, %v640
        %642 = vmatmul.f32.gmra.mxu0 %v258
        %v643 = vpop.f32.mrf.mxu0
        %v644 = vadd.f32 0.0, %v643
        %645 = vmatmul.f32.gmra.mxu0 %v259
        %v646 = vpop.f32.mrf.mxu0
        %v647 = vadd.f32 0.0, %v646
        %648 = vmatmul.f32.gmra.mxu0 %v260
        %v649 = vpop.f32.mrf.mxu0
        %v650 = vadd.f32 0.0, %v649
        %651 = vmatmul.f32.gmra.mxu0 %v261
        %v652 = vpop.f32.mrf.mxu0
        %v653 = vadd.f32 0.0, %v652
        %654 = vmatmul.f32.gmra.mxu0 %v262
        %v655 = vpop.f32.mrf.mxu0
        %v656 = vadd.f32 0.0, %v655
        %657 = vmatmul.f32.gmra.mxu0 %v263
        %v658 = vpop.f32.mrf.mxu0
        %v659 = vadd.f32 0.0, %v658
        %660 = vmatmul.f32.gmra.mxu0 %v264
        %v661 = vpop.f32.mrf.mxu0
        %v662 = vadd.f32 0.0, %v661
        %663 = vmatmul.f32.gmra.mxu0 %v265
        %v664 = vpop.f32.mrf.mxu0
        %v665 = vadd.f32 0.0, %v664
        %666 = vmatmul.f32.gmra.mxu0 %v266
        %v667 = vpop.f32.mrf.mxu0
        %v668 = vadd.f32 0.0, %v667
        %669 = vmatmul.f32.gmra.mxu0 %v267
        %v670 = vpop.f32.mrf.mxu0
        %v671 = vadd.f32 0.0, %v670
        %672 = vmatmul.f32.gmra.mxu0 %v268
        %v673 = vpop.f32.mrf.mxu0
        %v674 = vadd.f32 0.0, %v673
        %675 = vmatmul.f32.gmra.mxu0 %v269
        %v676 = vpop.f32.mrf.mxu0
        %v677 = vadd.f32 0.0, %v676
        %678 = vmatmul.f32.gmra.mxu0 %v270
        %v679 = vpop.f32.mrf.mxu0
        %v680 = vadd.f32 0.0, %v679
        %681 = vmatmul.f32.gmra.mxu0 %v271
        %v682 = vpop.f32.mrf.mxu0
        %v683 = vadd.f32 0.0, %v682
        %684 = vmatmul.f32.gmra.mxu0 %v272
        %v685 = vpop.f32.mrf.mxu0
        %v686 = vadd.f32 0.0, %v685
        %687 = vmatmul.f32.gmra.mxu0 %v273
        %v688 = vpop.f32.mrf.mxu0
        %v689 = vadd.f32 0.0, %v688
        %690 = vdwg.mxu0
        %v691 = vld [vmem:[%s2] sm:$0x1]
        %v693 = vperm.slane %v691, 0
        %v695 = vadd.f32 %v355, %v693
        %v696 = vadd.f32 %v357, %v693
        %v697 = vadd.f32 %v359, %v693
        %v698 = vadd.f32 %v361, %v693
        %v699 = vadd.f32 %v363, %v693
        %v700 = vadd.f32 %v365, %v693
        %v701 = vadd.f32 %v367, %v693
        %v702 = vadd.f32 %v369, %v693
        %v703 = vadd.f32 %v371, %v693
        %v704 = vadd.f32 %v373, %v693
        %v705 = vadd.f32 %v375, %v693
        %v706 = vadd.f32 %v377, %v693
        %v707 = vadd.f32 %v379, %v693
        %v708 = vadd.f32 %v381, %v693
        %v709 = vadd.f32 %v383, %v693
        %v710 = vadd.f32 %v385, %v693
        %v711 = vadd.f32 %v387, %v693
        %v712 = vadd.f32 %v389, %v693
        %v713 = vadd.f32 %v391, %v693
        %v714 = vadd.f32 %v393, %v693
        %v715 = vadd.f32 %v395, %v693
        %v716 = vadd.f32 %v397, %v693
        %v717 = vadd.f32 %v399, %v693
        %v718 = vadd.f32 %v401, %v693
        %v719 = vadd.f32 %v403, %v693
        %v720 = vadd.f32 %v405, %v693
        %v721 = vadd.f32 %v407, %v693
        %v722 = vadd.f32 %v409, %v693
        %v723 = vadd.f32 %v411, %v693
        %v724 = vadd.f32 %v413, %v693
        %v725 = vadd.f32 %v415, %v693
        %v726 = vadd.f32 %v417, %v693
        %v727 = vadd.f32 %v419, %v693
        %v728 = vadd.f32 %v421, %v693
        %v729 = vadd.f32 %v423, %v693
        %v730 = vadd.f32 %v425, %v693
        %v731 = vadd.f32 %v427, %v693
        %v732 = vadd.f32 %v429, %v693
        %v733 = vadd.f32 %v431, %v693
        %v734 = vadd.f32 %v433, %v693
        %v735 = vadd.f32 %v435, %v693
        %v736 = vadd.f32 %v437, %v693
        %v737 = vadd.f32 %v439, %v693
        %v738 = vadd.f32 %v441, %v693
        %v739 = vadd.f32 %v443, %v693
        %v740 = vadd.f32 %v445, %v693
        %v741 = vadd.f32 %v447, %v693
        %v742 = vadd.f32 %v449, %v693
        %v743 = vadd.f32 %v451, %v693
        %v744 = vadd.f32 %v453, %v693
        %v745 = vadd.f32 %v455, %v693
        %v746 = vadd.f32 %v457, %v693
        %v747 = vadd.f32 %v459, %v693
        %v748 = vadd.f32 %v461, %v693
        %v749 = vadd.f32 %v463, %v693
        %v750 = vadd.f32 %v465, %v693
        %v751 = vadd.f32 %v467, %v693
        %v752 = vadd.f32 %v469, %v693
        %v753 = vadd.f32 %v471, %v693
        %v754 = vadd.f32 %v473, %v693
        %v755 = vadd.f32 %v475, %v693
        %v756 = vadd.f32 %v477, %v693
        %v757 = vadd.f32 %v479, %v693
        %v758 = vadd.f32 %v481, %v693
        %v759 = vmul.f32 %v500, 2.0
        %v760 = vmul.f32 %v503, 2.0
        %v761 = vmul.f32 %v506, 2.0
        %v762 = vmul.f32 %v509, 2.0
        %v763 = vmul.f32 %v512, 2.0
        %v764 = vmul.f32 %v515, 2.0
        %v765 = vmul.f32 %v518, 2.0
        %v766 = vmul.f32 %v521, 2.0
        %v767 = vmul.f32 %v524, 2.0
        %v768 = vmul.f32 %v527, 2.0
        %v769 = vmul.f32 %v530, 2.0
        %v770 = vmul.f32 %v533, 2.0
        %v771 = vmul.f32 %v536, 2.0
        %v772 = vmul.f32 %v539, 2.0
        %v773 = vmul.f32 %v542, 2.0
        %v774 = vmul.f32 %v545, 2.0
        %v775 = vmul.f32 %v548, 2.0
        %v776 = vmul.f32 %v551, 2.0
        %v777 = vmul.f32 %v554, 2.0
        %v778 = vmul.f32 %v557, 2.0
        %v779 = vmul.f32 %v560, 2.0
        %v780 = vmul.f32 %v563, 2.0
        %v781 = vmul.f32 %v566, 2.0
        %v782 = vmul.f32 %v569, 2.0
        %v783 = vmul.f32 %v572, 2.0
        %v784 = vmul.f32 %v575, 2.0
        %v785 = vmul.f32 %v578, 2.0
        %v786 = vmul.f32 %v581, 2.0
        %v787 = vmul.f32 %v584, 2.0
        %v788 = vmul.f32 %v587, 2.0
        %v789 = vmul.f32 %v590, 2.0
        %v790 = vmul.f32 %v593, 2.0
        %v791 = vmul.f32 %v596, 2.0
        %v792 = vmul.f32 %v599, 2.0
        %v793 = vmul.f32 %v602, 2.0
        %v794 = vmul.f32 %v605, 2.0
        %v795 = vmul.f32 %v608, 2.0
        %v796 = vmul.f32 %v611, 2.0
        %v797 = vmul.f32 %v614, 2.0
        %v798 = vmul.f32 %v617, 2.0
        %v799 = vmul.f32 %v620, 2.0
        %v800 = vmul.f32 %v623, 2.0
        %v801 = vmul.f32 %v626, 2.0
        %v802 = vmul.f32 %v629, 2.0
        %v803 = vmul.f32 %v632, 2.0
        %v804 = vmul.f32 %v635, 2.0
        %v805 = vmul.f32 %v638, 2.0
        %v806 = vmul.f32 %v641, 2.0
        %v807 = vmul.f32 %v644, 2.0
        %v808 = vmul.f32 %v647, 2.0
        %v809 = vmul.f32 %v650, 2.0
        %v810 = vmul.f32 %v653, 2.0
        %v811 = vmul.f32 %v656, 2.0
        %v812 = vmul.f32 %v659, 2.0
        %v813 = vmul.f32 %v662, 2.0
        %v814 = vmul.f32 %v665, 2.0
        %v815 = vmul.f32 %v668, 2.0
        %v816 = vmul.f32 %v671, 2.0
        %v817 = vmul.f32 %v674, 2.0
        %v818 = vmul.f32 %v677, 2.0
        %v819 = vmul.f32 %v680, 2.0
        %v820 = vmul.f32 %v683, 2.0
        %v821 = vmul.f32 %v686, 2.0
        %v822 = vmul.f32 %v689, 2.0
        %v823 = vsub.f32 %v695, %v759
        %v824 = vsub.f32 %v696, %v760
        %v825 = vsub.f32 %v697, %v761
        %v826 = vsub.f32 %v698, %v762
        %v827 = vsub.f32 %v699, %v763
        %v828 = vsub.f32 %v700, %v764
        %v829 = vsub.f32 %v701, %v765
        %v830 = vsub.f32 %v702, %v766
        %v831 = vsub.f32 %v703, %v767
        %v832 = vsub.f32 %v704, %v768
        %v833 = vsub.f32 %v705, %v769
        %v834 = vsub.f32 %v706, %v770
        %v835 = vsub.f32 %v707, %v771
        %v836 = vsub.f32 %v708, %v772
        %v837 = vsub.f32 %v709, %v773
        %v838 = vsub.f32 %v710, %v774
        %v839 = vsub.f32 %v711, %v775
        %v840 = vsub.f32 %v712, %v776
        %v841 = vsub.f32 %v713, %v777
        %v842 = vsub.f32 %v714, %v778
        %v843 = vsub.f32 %v715, %v779
        %v844 = vsub.f32 %v716, %v780
        %v845 = vsub.f32 %v717, %v781
        %v846 = vsub.f32 %v718, %v782
        %v847 = vsub.f32 %v719, %v783
        %v848 = vsub.f32 %v720, %v784
        %v849 = vsub.f32 %v721, %v785
        %v850 = vsub.f32 %v722, %v786
        %v851 = vsub.f32 %v723, %v787
        %v852 = vsub.f32 %v724, %v788
        %v853 = vsub.f32 %v725, %v789
        %v854 = vsub.f32 %v726, %v790
        %v855 = vsub.f32 %v727, %v791
        %v856 = vsub.f32 %v728, %v792
        %v857 = vsub.f32 %v729, %v793
        %v858 = vsub.f32 %v730, %v794
        %v859 = vsub.f32 %v731, %v795
        %v860 = vsub.f32 %v732, %v796
        %v861 = vsub.f32 %v733, %v797
        %v862 = vsub.f32 %v734, %v798
        %v863 = vsub.f32 %v735, %v799
        %v864 = vsub.f32 %v736, %v800
        %v865 = vsub.f32 %v737, %v801
        %v866 = vsub.f32 %v738, %v802
        %v867 = vsub.f32 %v739, %v803
        %v868 = vsub.f32 %v740, %v804
        %v869 = vsub.f32 %v741, %v805
        %v870 = vsub.f32 %v742, %v806
        %v871 = vsub.f32 %v743, %v807
        %v872 = vsub.f32 %v744, %v808
        %v873 = vsub.f32 %v745, %v809
        %v874 = vsub.f32 %v746, %v810
        %v875 = vsub.f32 %v747, %v811
        %v876 = vsub.f32 %v748, %v812
        %v877 = vsub.f32 %v749, %v813
        %v878 = vsub.f32 %v750, %v814
        %v879 = vsub.f32 %v751, %v815
        %v880 = vsub.f32 %v752, %v816
        %v881 = vsub.f32 %v753, %v817
        %v882 = vsub.f32 %v754, %v818
        %v883 = vsub.f32 %v755, %v819
        %v884 = vsub.f32 %v756, %v820
        %v885 = vsub.f32 %v757, %v821
        %v886 = vsub.f32 %v758, %v822
        %v887 = vmul.f32 %v823, -2.0
        %v888 = vmul.f32 %v824, -2.0
        %v889 = vmul.f32 %v825, -2.0
        %v890 = vmul.f32 %v826, -2.0
        %v891 = vmul.f32 %v827, -2.0
        %v892 = vmul.f32 %v828, -2.0
        %v893 = vmul.f32 %v829, -2.0
        %v894 = vmul.f32 %v830, -2.0
        %v895 = vmul.f32 %v831, -2.0
        %v896 = vmul.f32 %v832, -2.0
        %v897 = vmul.f32 %v833, -2.0
        %v898 = vmul.f32 %v834, -2.0
        %v899 = vmul.f32 %v835, -2.0
        %v900 = vmul.f32 %v836, -2.0
        %v901 = vmul.f32 %v837, -2.0
        %v902 = vmul.f32 %v838, -2.0
        %v903 = vmul.f32 %v839, -2.0
        %v904 = vmul.f32 %v840, -2.0
        %v905 = vmul.f32 %v841, -2.0
        %v906 = vmul.f32 %v842, -2.0
        %v907 = vmul.f32 %v843, -2.0
        %v908 = vmul.f32 %v844, -2.0
        %v909 = vmul.f32 %v845, -2.0
        %v910 = vmul.f32 %v846, -2.0
        %v911 = vmul.f32 %v847, -2.0
        %v912 = vmul.f32 %v848, -2.0
        %v913 = vmul.f32 %v849, -2.0
        %v914 = vmul.f32 %v850, -2.0
        %v915 = vmul.f32 %v851, -2.0
        %v916 = vmul.f32 %v852, -2.0
        %v917 = vmul.f32 %v853, -2.0
        %v918 = vmul.f32 %v854, -2.0
        %v919 = vmul.f32 %v855, -2.0
        %v920 = vmul.f32 %v856, -2.0
        %v921 = vmul.f32 %v857, -2.0
        %v922 = vmul.f32 %v858, -2.0
        %v923 = vmul.f32 %v859, -2.0
        %v924 = vmul.f32 %v860, -2.0
        %v925 = vmul.f32 %v861, -2.0
        %v926 = vmul.f32 %v862, -2.0
        %v927 = vmul.f32 %v863, -2.0
        %v928 = vmul.f32 %v864, -2.0
        %v929 = vmul.f32 %v865, -2.0
        %v930 = vmul.f32 %v866, -2.0
        %v931 = vmul.f32 %v867, -2.0
        %v932 = vmul.f32 %v868, -2.0
        %v933 = vmul.f32 %v869, -2.0
        %v934 = vmul.f32 %v870, -2.0
        %v935 = vmul.f32 %v871, -2.0
        %v936 = vmul.f32 %v872, -2.0
        %v937 = vmul.f32 %v873, -2.0
        %v938 = vmul.f32 %v874, -2.0
        %v939 = vmul.f32 %v875, -2.0
        %v940 = vmul.f32 %v876, -2.0
        %v941 = vmul.f32 %v877, -2.0
        %v942 = vmul.f32 %v878, -2.0
        %v943 = vmul.f32 %v879, -2.0
        %v944 = vmul.f32 %v880, -2.0
        %v945 = vmul.f32 %v881, -2.0
        %v946 = vmul.f32 %v882, -2.0
        %v947 = vmul.f32 %v883, -2.0
        %v948 = vmul.f32 %v884, -2.0
        %v949 = vmul.f32 %v885, -2.0
        %v950 = vmul.f32 %v886, -2.0
        %v951 = vlaneseq
        %v952 = vand.u32 %v951, 127
        %vm953 = vcmp.lt.s32.totalorder %v952, 16
        %v954 = vsel %vm953, %v887, -inf
        %v955 = vsel %vm953, %v888, -inf
        %v956 = vsel %vm953, %v889, -inf
        %v957 = vsel %vm953, %v890, -inf
        %v958 = vsel %vm953, %v891, -inf
        %v959 = vsel %vm953, %v892, -inf
        %v960 = vsel %vm953, %v893, -inf
        %v961 = vsel %vm953, %v894, -inf
        %v962 = vsel %vm953, %v895, -inf
        %v963 = vsel %vm953, %v896, -inf
        %v964 = vsel %vm953, %v897, -inf
        %v965 = vsel %vm953, %v898, -inf
        %v966 = vsel %vm953, %v899, -inf
        %v967 = vsel %vm953, %v900, -inf
        %v968 = vsel %vm953, %v901, -inf
        %v969 = vsel %vm953, %v902, -inf
        %v970 = vsel %vm953, %v903, -inf
        %v971 = vsel %vm953, %v904, -inf
        %v972 = vsel %vm953, %v905, -inf
        %v973 = vsel %vm953, %v906, -inf
        %v974 = vsel %vm953, %v907, -inf
        %v975 = vsel %vm953, %v908, -inf
        %v976 = vsel %vm953, %v909, -inf
        %v977 = vsel %vm953, %v910, -inf
        %v978 = vsel %vm953, %v911, -inf
        %v979 = vsel %vm953, %v912, -inf
        %v980 = vsel %vm953, %v913, -inf
        %v981 = vsel %vm953, %v914, -inf
        %v982 = vsel %vm953, %v915, -inf
        %v983 = vsel %vm953, %v916, -inf
        %v984 = vsel %vm953, %v917, -inf
        %v985 = vsel %vm953, %v918, -inf
        %v986 = vsel %vm953, %v919, -inf
        %v987 = vsel %vm953, %v920, -inf
        %v988 = vsel %vm953, %v921, -inf
        %v989 = vsel %vm953, %v922, -inf
        %v990 = vsel %vm953, %v923, -inf
        %v991 = vsel %vm953, %v924, -inf
        %v992 = vsel %vm953, %v925, -inf
        %v993 = vsel %vm953, %v926, -inf
        %v994 = vsel %vm953, %v927, -inf
        %v995 = vsel %vm953, %v928, -inf
        %v996 = vsel %vm953, %v929, -inf
        %v997 = vsel %vm953, %v930, -inf
        %v998 = vsel %vm953, %v931, -inf
        %v999 = vsel %vm953, %v932, -inf
        %v1000 = vsel %vm953, %v933, -inf
        %v1001 = vsel %vm953, %v934, -inf
        %v1002 = vsel %vm953, %v935, -inf
        %v1003 = vsel %vm953, %v936, -inf
        %v1004 = vsel %vm953, %v937, -inf
        %v1005 = vsel %vm953, %v938, -inf
        %v1006 = vsel %vm953, %v939, -inf
        %v1007 = vsel %vm953, %v940, -inf
        %v1008 = vsel %vm953, %v941, -inf
        %v1009 = vsel %vm953, %v942, -inf
        %v1010 = vsel %vm953, %v943, -inf
        %v1011 = vsel %vm953, %v944, -inf
        %v1012 = vsel %vm953, %v945, -inf
        %v1013 = vsel %vm953, %v946, -inf
        %v1014 = vsel %vm953, %v947, -inf
        %v1015 = vsel %vm953, %v948, -inf
        %v1016 = vsel %vm953, %v949, -inf
        %v1017 = vsel %vm953, %v950, -inf
        %1018 = vmax.xlane.f32.xlu0 %v954
        %v1019 = vpop.xlane.xlu0 %1018
        %1020 = vmax.xlane.f32.xlu0 %v955
        %v1021 = vpop.xlane.xlu0 %1020
        %1022 = vmax.xlane.f32.xlu0 %v956
        %v1023 = vpop.xlane.xlu0 %1022
        %1024 = vmax.xlane.f32.xlu0 %v957
        %v1025 = vpop.xlane.xlu0 %1024
        %1026 = vmax.xlane.f32.xlu0 %v958
        %v1027 = vpop.xlane.xlu0 %1026
        %1028 = vmax.xlane.f32.xlu0 %v959
        %v1029 = vpop.xlane.xlu0 %1028
        %1030 = vmax.xlane.f32.xlu0 %v960
        %v1031 = vpop.xlane.xlu0 %1030
        %1032 = vmax.xlane.f32.xlu0 %v961
        %v1033 = vpop.xlane.xlu0 %1032
        %1034 = vmax.xlane.f32.xlu0 %v962
        %v1035 = vpop.xlane.xlu0 %1034
        %1036 = vmax.xlane.f32.xlu0 %v963
        %v1037 = vpop.xlane.xlu0 %1036
        %1038 = vmax.xlane.f32.xlu0 %v964
        %v1039 = vpop.xlane.xlu0 %1038
        %1040 = vmax.xlane.f32.xlu0 %v965
        %v1041 = vpop.xlane.xlu0 %1040
        %1042 = vmax.xlane.f32.xlu0 %v966
        %v1043 = vpop.xlane.xlu0 %1042
        %1044 = vmax.xlane.f32.xlu0 %v967
        %v1045 = vpop.xlane.xlu0 %1044
        %1046 = vmax.xlane.f32.xlu0 %v968
        %v1047 = vpop.xlane.xlu0 %1046
        %1048 = vmax.xlane.f32.xlu0 %v969
        %v1049 = vpop.xlane.xlu0 %1048
        %1050 = vmax.xlane.f32.xlu0 %v970
        %v1051 = vpop.xlane.xlu0 %1050
        %1052 = vmax.xlane.f32.xlu0 %v971
        %v1053 = vpop.xlane.xlu0 %1052
        %1054 = vmax.xlane.f32.xlu0 %v972
        %v1055 = vpop.xlane.xlu0 %1054
        %1056 = vmax.xlane.f32.xlu0 %v973
        %v1057 = vpop.xlane.xlu0 %1056
        %1058 = vmax.xlane.f32.xlu0 %v974
        %v1059 = vpop.xlane.xlu0 %1058
        %1060 = vmax.xlane.f32.xlu0 %v975
        %v1061 = vpop.xlane.xlu0 %1060
        %1062 = vmax.xlane.f32.xlu0 %v976
        %v1063 = vpop.xlane.xlu0 %1062
        %1064 = vmax.xlane.f32.xlu0 %v977
        %v1065 = vpop.xlane.xlu0 %1064
        %1066 = vmax.xlane.f32.xlu0 %v978
        %v1067 = vpop.xlane.xlu0 %1066
        %1068 = vmax.xlane.f32.xlu0 %v979
        %v1069 = vpop.xlane.xlu0 %1068
        %1070 = vmax.xlane.f32.xlu0 %v980
        %v1071 = vpop.xlane.xlu0 %1070
        %1072 = vmax.xlane.f32.xlu0 %v981
        %v1073 = vpop.xlane.xlu0 %1072
        %1074 = vmax.xlane.f32.xlu0 %v982
        %v1075 = vpop.xlane.xlu0 %1074
        %1076 = vmax.xlane.f32.xlu0 %v983
        %v1077 = vpop.xlane.xlu0 %1076
        %1078 = vmax.xlane.f32.xlu0 %v984
        %v1079 = vpop.xlane.xlu0 %1078
        %1080 = vmax.xlane.f32.xlu0 %v985
        %v1081 = vpop.xlane.xlu0 %1080
        %1082 = vmax.xlane.f32.xlu0 %v986
        %v1083 = vpop.xlane.xlu0 %1082
        %1084 = vmax.xlane.f32.xlu0 %v987
        %v1085 = vpop.xlane.xlu0 %1084
        %1086 = vmax.xlane.f32.xlu0 %v988
        %v1087 = vpop.xlane.xlu0 %1086
        %1088 = vmax.xlane.f32.xlu0 %v989
        %v1089 = vpop.xlane.xlu0 %1088
        %1090 = vmax.xlane.f32.xlu0 %v990
        %v1091 = vpop.xlane.xlu0 %1090
        %1092 = vmax.xlane.f32.xlu0 %v991
        %v1093 = vpop.xlane.xlu0 %1092
        %1094 = vmax.xlane.f32.xlu0 %v992
        %v1095 = vpop.xlane.xlu0 %1094
        %1096 = vmax.xlane.f32.xlu0 %v993
        %v1097 = vpop.xlane.xlu0 %1096
        %1098 = vmax.xlane.f32.xlu0 %v994
        %v1099 = vpop.xlane.xlu0 %1098
        %1100 = vmax.xlane.f32.xlu0 %v995
        %v1101 = vpop.xlane.xlu0 %1100
        %1102 = vmax.xlane.f32.xlu0 %v996
        %v1103 = vpop.xlane.xlu0 %1102
        %1104 = vmax.xlane.f32.xlu0 %v997
        %v1105 = vpop.xlane.xlu0 %1104
        %1106 = vmax.xlane.f32.xlu0 %v998
        %v1107 = vpop.xlane.xlu0 %1106
        %1108 = vmax.xlane.f32.xlu0 %v999
        %v1109 = vpop.xlane.xlu0 %1108
        %1110 = vmax.xlane.f32.xlu0 %v1000
        %v1111 = vpop.xlane.xlu0 %1110
        %1112 = vmax.xlane.f32.xlu0 %v1001
        %v1113 = vpop.xlane.xlu0 %1112
        %1114 = vmax.xlane.f32.xlu0 %v1002
        %v1115 = vpop.xlane.xlu0 %1114
        %1116 = vmax.xlane.f32.xlu0 %v1003
        %v1117 = vpop.xlane.xlu0 %1116
        %1118 = vmax.xlane.f32.xlu0 %v1004
        %v1119 = vpop.xlane.xlu0 %1118
        %1120 = vmax.xlane.f32.xlu0 %v1005
        %v1121 = vpop.xlane.xlu0 %1120
        %1122 = vmax.xlane.f32.xlu0 %v1006
        %v1123 = vpop.xlane.xlu0 %1122
        %1124 = vmax.xlane.f32.xlu0 %v1007
        %v1125 = vpop.xlane.xlu0 %1124
        %1126 = vmax.xlane.f32.xlu0 %v1008
        %v1127 = vpop.xlane.xlu0 %1126
        %1128 = vmax.xlane.f32.xlu0 %v1009
        %v1129 = vpop.xlane.xlu0 %1128
        %1130 = vmax.xlane.f32.xlu0 %v1010
        %v1131 = vpop.xlane.xlu0 %1130
        %1132 = vmax.xlane.f32.xlu0 %v1011
        %v1133 = vpop.xlane.xlu0 %1132
        %1134 = vmax.xlane.f32.xlu0 %v1012
        %v1135 = vpop.xlane.xlu0 %1134
        %1136 = vmax.xlane.f32.xlu0 %v1013
        %v1137 = vpop.xlane.xlu0 %1136
        %1138 = vmax.xlane.f32.xlu0 %v1014
        %v1139 = vpop.xlane.xlu0 %1138
        %1140 = vmax.xlane.f32.xlu0 %v1015
        %v1141 = vpop.xlane.xlu0 %1140
        %1142 = vmax.xlane.f32.xlu0 %v1016
        %v1143 = vpop.xlane.xlu0 %1142
        %1144 = vmax.xlane.f32.xlu0 %v1017
        %v1145 = vpop.xlane.xlu0 %1144
        %v1146 = vsub.f32 %v954, %v1019
        %v1147 = vsub.f32 %v955, %v1021
        %v1148 = vsub.f32 %v956, %v1023
        %v1149 = vsub.f32 %v957, %v1025
        %v1150 = vsub.f32 %v958, %v1027
        %v1151 = vsub.f32 %v959, %v1029
        %v1152 = vsub.f32 %v960, %v1031
        %v1153 = vsub.f32 %v961, %v1033
        %v1154 = vsub.f32 %v962, %v1035
        %v1155 = vsub.f32 %v963, %v1037
        %v1156 = vsub.f32 %v964, %v1039
        %v1157 = vsub.f32 %v965, %v1041
        %v1158 = vsub.f32 %v966, %v1043
        %v1159 = vsub.f32 %v967, %v1045
        %v1160 = vsub.f32 %v968, %v1047
        %v1161 = vsub.f32 %v969, %v1049
        %v1162 = vsub.f32 %v970, %v1051
        %v1163 = vsub.f32 %v971, %v1053
        %v1164 = vsub.f32 %v972, %v1055
        %v1165 = vsub.f32 %v973, %v1057
        %v1166 = vsub.f32 %v974, %v1059
        %v1167 = vsub.f32 %v975, %v1061
        %v1168 = vsub.f32 %v976, %v1063
        %v1169 = vsub.f32 %v977, %v1065
        %v1170 = vsub.f32 %v978, %v1067
        %v1171 = vsub.f32 %v979, %v1069
        %v1172 = vsub.f32 %v980, %v1071
        %v1173 = vsub.f32 %v981, %v1073
        %v1174 = vsub.f32 %v982, %v1075
        %v1175 = vsub.f32 %v983, %v1077
        %v1176 = vsub.f32 %v984, %v1079
        %v1177 = vsub.f32 %v985, %v1081
        %v1178 = vsub.f32 %v986, %v1083
        %v1179 = vsub.f32 %v987, %v1085
        %v1180 = vsub.f32 %v988, %v1087
        %v1181 = vsub.f32 %v989, %v1089
        %v1182 = vsub.f32 %v990, %v1091
        %v1183 = vsub.f32 %v991, %v1093
        %v1184 = vsub.f32 %v992, %v1095
        %v1185 = vsub.f32 %v993, %v1097
        %v1186 = vsub.f32 %v994, %v1099
        %v1187 = vsub.f32 %v995, %v1101
        %v1188 = vsub.f32 %v996, %v1103
        %v1189 = vsub.f32 %v997, %v1105
        %v1190 = vsub.f32 %v998, %v1107
        %v1191 = vsub.f32 %v999, %v1109
        %v1192 = vsub.f32 %v1000, %v1111
        %v1193 = vsub.f32 %v1001, %v1113
        %v1194 = vsub.f32 %v1002, %v1115
        %v1195 = vsub.f32 %v1003, %v1117
        %v1196 = vsub.f32 %v1004, %v1119
        %v1197 = vsub.f32 %v1005, %v1121
        %v1198 = vsub.f32 %v1006, %v1123
        %v1199 = vsub.f32 %v1007, %v1125
        %v1200 = vsub.f32 %v1008, %v1127
        %v1201 = vsub.f32 %v1009, %v1129
        %v1202 = vsub.f32 %v1010, %v1131
        %v1203 = vsub.f32 %v1011, %v1133
        %v1204 = vsub.f32 %v1012, %v1135
        %v1205 = vsub.f32 %v1013, %v1137
        %v1206 = vsub.f32 %v1014, %v1139
        %v1207 = vsub.f32 %v1015, %v1141
        %v1208 = vsub.f32 %v1016, %v1143
        %v1209 = vsub.f32 %v1017, %v1145
        %v1210 = vmul.f32 %v1146, 1.442695
        %v1211 = vpow.pop %v1210
        %v1212 = vmul.f32 %v1147, 1.442695
        %v1213 = vpow.pop %v1212
        %v1214 = vmul.f32 %v1148, 1.442695
        %v1215 = vpow.pop %v1214
        %v1216 = vmul.f32 %v1149, 1.442695
        %v1217 = vpow.pop %v1216
        %v1218 = vmul.f32 %v1150, 1.442695
        %v1219 = vpow.pop %v1218
        %v1220 = vmul.f32 %v1151, 1.442695
        %v1221 = vpow.pop %v1220
        %v1222 = vmul.f32 %v1152, 1.442695
        %v1223 = vpow.pop %v1222
        %v1224 = vmul.f32 %v1153, 1.442695
        %v1225 = vpow.pop %v1224
        %v1226 = vmul.f32 %v1154, 1.442695
        %v1227 = vpow.pop %v1226
        %v1228 = vmul.f32 %v1155, 1.442695
        %v1229 = vpow.pop %v1228
        %v1230 = vmul.f32 %v1156, 1.442695
        %v1231 = vpow.pop %v1230
        %v1232 = vmul.f32 %v1157, 1.442695
        %v1233 = vpow.pop %v1232
        %v1234 = vmul.f32 %v1158, 1.442695
        %v1235 = vpow.pop %v1234
        %v1236 = vmul.f32 %v1159, 1.442695
        %v1237 = vpow.pop %v1236
        %v1238 = vmul.f32 %v1160, 1.442695
        %v1239 = vpow.pop %v1238
        %v1240 = vmul.f32 %v1161, 1.442695
        %v1241 = vpow.pop %v1240
        %v1242 = vmul.f32 %v1162, 1.442695
        %v1243 = vpow.pop %v1242
        %v1244 = vmul.f32 %v1163, 1.442695
        %v1245 = vpow.pop %v1244
        %v1246 = vmul.f32 %v1164, 1.442695
        %v1247 = vpow.pop %v1246
        %v1248 = vmul.f32 %v1165, 1.442695
        %v1249 = vpow.pop %v1248
        %v1250 = vmul.f32 %v1166, 1.442695
        %v1251 = vpow.pop %v1250
        %v1252 = vmul.f32 %v1167, 1.442695
        %v1253 = vpow.pop %v1252
        %v1254 = vmul.f32 %v1168, 1.442695
        %v1255 = vpow.pop %v1254
        %v1256 = vmul.f32 %v1169, 1.442695
        %v1257 = vpow.pop %v1256
        %v1258 = vmul.f32 %v1170, 1.442695
        %v1259 = vpow.pop %v1258
        %v1260 = vmul.f32 %v1171, 1.442695
        %v1261 = vpow.pop %v1260
        %v1262 = vmul.f32 %v1172, 1.442695
        %v1263 = vpow.pop %v1262
        %v1264 = vmul.f32 %v1173, 1.442695
        %v1265 = vpow.pop %v1264
        %v1266 = vmul.f32 %v1174, 1.442695
        %v1267 = vpow.pop %v1266
        %v1268 = vmul.f32 %v1175, 1.442695
        %v1269 = vpow.pop %v1268
        %v1270 = vmul.f32 %v1176, 1.442695
        %v1271 = vpow.pop %v1270
        %v1272 = vmul.f32 %v1177, 1.442695
        %v1273 = vpow.pop %v1272
        %v1274 = vmul.f32 %v1178, 1.442695
        %v1275 = vpow.pop %v1274
        %v1276 = vmul.f32 %v1179, 1.442695
        %v1277 = vpow.pop %v1276
        %v1278 = vmul.f32 %v1180, 1.442695
        %v1279 = vpow.pop %v1278
        %v1280 = vmul.f32 %v1181, 1.442695
        %v1281 = vpow.pop %v1280
        %v1282 = vmul.f32 %v1182, 1.442695
        %v1283 = vpow.pop %v1282
        %v1284 = vmul.f32 %v1183, 1.442695
        %v1285 = vpow.pop %v1284
        %v1286 = vmul.f32 %v1184, 1.442695
        %v1287 = vpow.pop %v1286
        %v1288 = vmul.f32 %v1185, 1.442695
        %v1289 = vpow.pop %v1288
        %v1290 = vmul.f32 %v1186, 1.442695
        %v1291 = vpow.pop %v1290
        %v1292 = vmul.f32 %v1187, 1.442695
        %v1293 = vpow.pop %v1292
        %v1294 = vmul.f32 %v1188, 1.442695
        %v1295 = vpow.pop %v1294
        %v1296 = vmul.f32 %v1189, 1.442695
        %v1297 = vpow.pop %v1296
        %v1298 = vmul.f32 %v1190, 1.442695
        %v1299 = vpow.pop %v1298
        %v1300 = vmul.f32 %v1191, 1.442695
        %v1301 = vpow.pop %v1300
        %v1302 = vmul.f32 %v1192, 1.442695
        %v1303 = vpow.pop %v1302
        %v1304 = vmul.f32 %v1193, 1.442695
        %v1305 = vpow.pop %v1304
        %v1306 = vmul.f32 %v1194, 1.442695
        %v1307 = vpow.pop %v1306
        %v1308 = vmul.f32 %v1195, 1.442695
        %v1309 = vpow.pop %v1308
        %v1310 = vmul.f32 %v1196, 1.442695
        %v1311 = vpow.pop %v1310
        %v1312 = vmul.f32 %v1197, 1.442695
        %v1313 = vpow.pop %v1312
        %v1314 = vmul.f32 %v1198, 1.442695
        %v1315 = vpow.pop %v1314
        %v1316 = vmul.f32 %v1199, 1.442695
        %v1317 = vpow.pop %v1316
        %v1318 = vmul.f32 %v1200, 1.442695
        %v1319 = vpow.pop %v1318
        %v1320 = vmul.f32 %v1201, 1.442695
        %v1321 = vpow.pop %v1320
        %v1322 = vmul.f32 %v1202, 1.442695
        %v1323 = vpow.pop %v1322
        %v1324 = vmul.f32 %v1203, 1.442695
        %v1325 = vpow.pop %v1324
        %v1326 = vmul.f32 %v1204, 1.442695
        %v1327 = vpow.pop %v1326
        %v1328 = vmul.f32 %v1205, 1.442695
        %v1329 = vpow.pop %v1328
        %v1330 = vmul.f32 %v1206, 1.442695
        %v1331 = vpow.pop %v1330
        %v1332 = vmul.f32 %v1207, 1.442695
        %v1333 = vpow.pop %v1332
        %v1334 = vmul.f32 %v1208, 1.442695
        %v1335 = vpow.pop %v1334
        %v1336 = vmul.f32 %v1209, 1.442695
        %v1337 = vpow.pop %v1336
        %1338 = vadd.xlane.f32.xlu0 %v1211
        %v1339 = vpop.xlane.xlu0 %1338
        %1340 = vadd.xlane.f32.xlu0 %v1213
        %v1341 = vpop.xlane.xlu0 %1340
        %1342 = vadd.xlane.f32.xlu0 %v1215
        %v1343 = vpop.xlane.xlu0 %1342
        %1344 = vadd.xlane.f32.xlu0 %v1217
        %v1345 = vpop.xlane.xlu0 %1344
        %1346 = vadd.xlane.f32.xlu0 %v1219
        %v1347 = vpop.xlane.xlu0 %1346
        %1348 = vadd.xlane.f32.xlu0 %v1221
        %v1349 = vpop.xlane.xlu0 %1348
        %1350 = vadd.xlane.f32.xlu0 %v1223
        %v1351 = vpop.xlane.xlu0 %1350
        %1352 = vadd.xlane.f32.xlu0 %v1225
        %v1353 = vpop.xlane.xlu0 %1352
        %1354 = vadd.xlane.f32.xlu0 %v1227
        %v1355 = vpop.xlane.xlu0 %1354
        %1356 = vadd.xlane.f32.xlu0 %v1229
        %v1357 = vpop.xlane.xlu0 %1356
        %1358 = vadd.xlane.f32.xlu0 %v1231
        %v1359 = vpop.xlane.xlu0 %1358
        %1360 = vadd.xlane.f32.xlu0 %v1233
        %v1361 = vpop.xlane.xlu0 %1360
        %1362 = vadd.xlane.f32.xlu0 %v1235
        %v1363 = vpop.xlane.xlu0 %1362
        %1364 = vadd.xlane.f32.xlu0 %v1237
        %v1365 = vpop.xlane.xlu0 %1364
        %1366 = vadd.xlane.f32.xlu0 %v1239
        %v1367 = vpop.xlane.xlu0 %1366
        %1368 = vadd.xlane.f32.xlu0 %v1241
        %v1369 = vpop.xlane.xlu0 %1368
        %1370 = vadd.xlane.f32.xlu0 %v1243
        %v1371 = vpop.xlane.xlu0 %1370
        %1372 = vadd.xlane.f32.xlu0 %v1245
        %v1373 = vpop.xlane.xlu0 %1372
        %1374 = vadd.xlane.f32.xlu0 %v1247
        %v1375 = vpop.xlane.xlu0 %1374
        %1376 = vadd.xlane.f32.xlu0 %v1249
        %v1377 = vpop.xlane.xlu0 %1376
        %1378 = vadd.xlane.f32.xlu0 %v1251
        %v1379 = vpop.xlane.xlu0 %1378
        %1380 = vadd.xlane.f32.xlu0 %v1253
        %v1381 = vpop.xlane.xlu0 %1380
        %1382 = vadd.xlane.f32.xlu0 %v1255
        %v1383 = vpop.xlane.xlu0 %1382
        %1384 = vadd.xlane.f32.xlu0 %v1257
        %v1385 = vpop.xlane.xlu0 %1384
        %1386 = vadd.xlane.f32.xlu0 %v1259
        %v1387 = vpop.xlane.xlu0 %1386
        %1388 = vadd.xlane.f32.xlu0 %v1261
        %v1389 = vpop.xlane.xlu0 %1388
        %1390 = vadd.xlane.f32.xlu0 %v1263
        %v1391 = vpop.xlane.xlu0 %1390
        %1392 = vadd.xlane.f32.xlu0 %v1265
        %v1393 = vpop.xlane.xlu0 %1392
        %1394 = vadd.xlane.f32.xlu0 %v1267
        %v1395 = vpop.xlane.xlu0 %1394
        %1396 = vadd.xlane.f32.xlu0 %v1269
        %v1397 = vpop.xlane.xlu0 %1396
        %1398 = vadd.xlane.f32.xlu0 %v1271
        %v1399 = vpop.xlane.xlu0 %1398
        %1400 = vadd.xlane.f32.xlu0 %v1273
        %v1401 = vpop.xlane.xlu0 %1400
        %1402 = vadd.xlane.f32.xlu0 %v1275
        %v1403 = vpop.xlane.xlu0 %1402
        %1404 = vadd.xlane.f32.xlu0 %v1277
        %v1405 = vpop.xlane.xlu0 %1404
        %1406 = vadd.xlane.f32.xlu0 %v1279
        %v1407 = vpop.xlane.xlu0 %1406
        %1408 = vadd.xlane.f32.xlu0 %v1281
        %v1409 = vpop.xlane.xlu0 %1408
        %1410 = vadd.xlane.f32.xlu0 %v1283
        %v1411 = vpop.xlane.xlu0 %1410
        %1412 = vadd.xlane.f32.xlu0 %v1285
        %v1413 = vpop.xlane.xlu0 %1412
        %1414 = vadd.xlane.f32.xlu0 %v1287
        %v1415 = vpop.xlane.xlu0 %1414
        %1416 = vadd.xlane.f32.xlu0 %v1289
        %v1417 = vpop.xlane.xlu0 %1416
        %1418 = vadd.xlane.f32.xlu0 %v1291
        %v1419 = vpop.xlane.xlu0 %1418
        %1420 = vadd.xlane.f32.xlu0 %v1293
        %v1421 = vpop.xlane.xlu0 %1420
        %1422 = vadd.xlane.f32.xlu0 %v1295
        %v1423 = vpop.xlane.xlu0 %1422
        %1424 = vadd.xlane.f32.xlu0 %v1297
        %v1425 = vpop.xlane.xlu0 %1424
        %1426 = vadd.xlane.f32.xlu0 %v1299
        %v1427 = vpop.xlane.xlu0 %1426
        %1428 = vadd.xlane.f32.xlu0 %v1301
        %v1429 = vpop.xlane.xlu0 %1428
        %1430 = vadd.xlane.f32.xlu0 %v1303
        %v1431 = vpop.xlane.xlu0 %1430
        %1432 = vadd.xlane.f32.xlu0 %v1305
        %v1433 = vpop.xlane.xlu0 %1432
        %1434 = vadd.xlane.f32.xlu0 %v1307
        %v1435 = vpop.xlane.xlu0 %1434
        %1436 = vadd.xlane.f32.xlu0 %v1309
        %v1437 = vpop.xlane.xlu0 %1436
        %1438 = vadd.xlane.f32.xlu0 %v1311
        %v1439 = vpop.xlane.xlu0 %1438
        %1440 = vadd.xlane.f32.xlu0 %v1313
        %v1441 = vpop.xlane.xlu0 %1440
        %1442 = vadd.xlane.f32.xlu0 %v1315
        %v1443 = vpop.xlane.xlu0 %1442
        %1444 = vadd.xlane.f32.xlu0 %v1317
        %v1445 = vpop.xlane.xlu0 %1444
        %1446 = vadd.xlane.f32.xlu0 %v1319
        %v1447 = vpop.xlane.xlu0 %1446
        %1448 = vadd.xlane.f32.xlu0 %v1321
        %v1449 = vpop.xlane.xlu0 %1448
        %1450 = vadd.xlane.f32.xlu0 %v1323
        %v1451 = vpop.xlane.xlu0 %1450
        %1452 = vadd.xlane.f32.xlu0 %v1325
        %v1453 = vpop.xlane.xlu0 %1452
        %1454 = vadd.xlane.f32.xlu0 %v1327
        %v1455 = vpop.xlane.xlu0 %1454
        %1456 = vadd.xlane.f32.xlu0 %v1329
        %v1457 = vpop.xlane.xlu0 %1456
        %1458 = vadd.xlane.f32.xlu0 %v1331
        %v1459 = vpop.xlane.xlu0 %1458
        %1460 = vadd.xlane.f32.xlu0 %v1333
        %v1461 = vpop.xlane.xlu0 %1460
        %1462 = vadd.xlane.f32.xlu0 %v1335
        %v1463 = vpop.xlane.xlu0 %1462
        %1464 = vadd.xlane.f32.xlu0 %v1337
        %v1465 = vpop.xlane.xlu0 %1464
        %v1466 = vrcp.pop %v1339
        %v1467 = vmul.f32 %v1339, %v1466
        %v1468 = vsub.f32 1.0, %v1467
        %v1469 = vmul.f32 %v1466, %v1468
        %v1470 = vadd.f32 %v1466, %v1469
        %vm1471 = vweird.f32 %v1339
        %vm1472 = vweird.f32 %v1466
        %vm1473 = vmor %vm1471, %vm1472
        %v1474 = vsel %vm1473, %v1466, %v1470
        %v1475 = vand.u32 2147483647, %v1339
        %vm1476 = vcmp.eq.f32.partialorder %v1475, 8.507059e+37
        %v1477 = vand.u32 %v1339, 2147483648
        %v1478 = vor.u32 1.1754944e-38, %v1477
        %v1479 = vsel %vm1476, %v1478, %v1474
        %v1480 = vrcp.pop %v1341
        %v1481 = vmul.f32 %v1341, %v1480
        %v1482 = vsub.f32 1.0, %v1481
        %v1483 = vmul.f32 %v1480, %v1482
        %v1484 = vadd.f32 %v1480, %v1483
        %vm1485 = vweird.f32 %v1341
        %vm1486 = vweird.f32 %v1480
        %vm1487 = vmor %vm1485, %vm1486
        %v1488 = vsel %vm1487, %v1480, %v1484
        %v1489 = vand.u32 2147483647, %v1341
        %vm1490 = vcmp.eq.f32.partialorder %v1489, 8.507059e+37
        %v1491 = vand.u32 %v1341, 2147483648
        %v1492 = vor.u32 1.1754944e-38, %v1491
        %v1493 = vsel %vm1490, %v1492, %v1488
        %v1494 = vrcp.pop %v1343
        %v1495 = vmul.f32 %v1343, %v1494
        %v1496 = vsub.f32 1.0, %v1495
        %v1497 = vmul.f32 %v1494, %v1496
        %v1498 = vadd.f32 %v1494, %v1497
        %vm1499 = vweird.f32 %v1343
        %vm1500 = vweird.f32 %v1494
        %vm1501 = vmor %vm1499, %vm1500
        %v1502 = vsel %vm1501, %v1494, %v1498
        %v1503 = vand.u32 2147483647, %v1343
        %vm1504 = vcmp.eq.f32.partialorder %v1503, 8.507059e+37
        %v1505 = vand.u32 %v1343, 2147483648
        %v1506 = vor.u32 1.1754944e-38, %v1505
        %v1507 = vsel %vm1504, %v1506, %v1502
        %v1508 = vrcp.pop %v1345
        %v1509 = vmul.f32 %v1345, %v1508
        %v1510 = vsub.f32 1.0, %v1509
        %v1511 = vmul.f32 %v1508, %v1510
        %v1512 = vadd.f32 %v1508, %v1511
        %vm1513 = vweird.f32 %v1345
        %vm1514 = vweird.f32 %v1508
        %vm1515 = vmor %vm1513, %vm1514
        %v1516 = vsel %vm1515, %v1508, %v1512
        %v1517 = vand.u32 2147483647, %v1345
        %vm1518 = vcmp.eq.f32.partialorder %v1517, 8.507059e+37
        %v1519 = vand.u32 %v1345, 2147483648
        %v1520 = vor.u32 1.1754944e-38, %v1519
        %v1521 = vsel %vm1518, %v1520, %v1516
        %v1522 = vrcp.pop %v1347
        %v1523 = vmul.f32 %v1347, %v1522
        %v1524 = vsub.f32 1.0, %v1523
        %v1525 = vmul.f32 %v1522, %v1524
        %v1526 = vadd.f32 %v1522, %v1525
        %vm1527 = vweird.f32 %v1347
        %vm1528 = vweird.f32 %v1522
        %vm1529 = vmor %vm1527, %vm1528
        %v1530 = vsel %vm1529, %v1522, %v1526
        %v1531 = vand.u32 2147483647, %v1347
        %vm1532 = vcmp.eq.f32.partialorder %v1531, 8.507059e+37
        %v1533 = vand.u32 %v1347, 2147483648
        %v1534 = vor.u32 1.1754944e-38, %v1533
        %v1535 = vsel %vm1532, %v1534, %v1530
        %v1536 = vrcp.pop %v1349
        %v1537 = vmul.f32 %v1349, %v1536
        %v1538 = vsub.f32 1.0, %v1537
        %v1539 = vmul.f32 %v1536, %v1538
        %v1540 = vadd.f32 %v1536, %v1539
        %vm1541 = vweird.f32 %v1349
        %vm1542 = vweird.f32 %v1536
        %vm1543 = vmor %vm1541, %vm1542
        %v1544 = vsel %vm1543, %v1536, %v1540
        %v1545 = vand.u32 2147483647, %v1349
        %vm1546 = vcmp.eq.f32.partialorder %v1545, 8.507059e+37
        %v1547 = vand.u32 %v1349, 2147483648
        %v1548 = vor.u32 1.1754944e-38, %v1547
        %v1549 = vsel %vm1546, %v1548, %v1544
        %v1550 = vrcp.pop %v1351
        %v1551 = vmul.f32 %v1351, %v1550
        %v1552 = vsub.f32 1.0, %v1551
        %v1553 = vmul.f32 %v1550, %v1552
        %v1554 = vadd.f32 %v1550, %v1553
        %vm1555 = vweird.f32 %v1351
        %vm1556 = vweird.f32 %v1550
        %vm1557 = vmor %vm1555, %vm1556
        %v1558 = vsel %vm1557, %v1550, %v1554
        %v1559 = vand.u32 2147483647, %v1351
        %vm1560 = vcmp.eq.f32.partialorder %v1559, 8.507059e+37
        %v1561 = vand.u32 %v1351, 2147483648
        %v1562 = vor.u32 1.1754944e-38, %v1561
        %v1563 = vsel %vm1560, %v1562, %v1558
        %v1564 = vrcp.pop %v1353
        %v1565 = vmul.f32 %v1353, %v1564
        %v1566 = vsub.f32 1.0, %v1565
        %v1567 = vmul.f32 %v1564, %v1566
        %v1568 = vadd.f32 %v1564, %v1567
        %vm1569 = vweird.f32 %v1353
        %vm1570 = vweird.f32 %v1564
        %vm1571 = vmor %vm1569, %vm1570
        %v1572 = vsel %vm1571, %v1564, %v1568
        %v1573 = vand.u32 2147483647, %v1353
        %vm1574 = vcmp.eq.f32.partialorder %v1573, 8.507059e+37
        %v1575 = vand.u32 %v1353, 2147483648
        %v1576 = vor.u32 1.1754944e-38, %v1575
        %v1577 = vsel %vm1574, %v1576, %v1572
        %v1578 = vrcp.pop %v1355
        %v1579 = vmul.f32 %v1355, %v1578
        %v1580 = vsub.f32 1.0, %v1579
        %v1581 = vmul.f32 %v1578, %v1580
        %v1582 = vadd.f32 %v1578, %v1581
        %vm1583 = vweird.f32 %v1355
        %vm1584 = vweird.f32 %v1578
        %vm1585 = vmor %vm1583, %vm1584
        %v1586 = vsel %vm1585, %v1578, %v1582
        %v1587 = vand.u32 2147483647, %v1355
        %vm1588 = vcmp.eq.f32.partialorder %v1587, 8.507059e+37
        %v1589 = vand.u32 %v1355, 2147483648
        %v1590 = vor.u32 1.1754944e-38, %v1589
        %v1591 = vsel %vm1588, %v1590, %v1586
        %v1592 = vrcp.pop %v1357
        %v1593 = vmul.f32 %v1357, %v1592
        %v1594 = vsub.f32 1.0, %v1593
        %v1595 = vmul.f32 %v1592, %v1594
        %v1596 = vadd.f32 %v1592, %v1595
        %vm1597 = vweird.f32 %v1357
        %vm1598 = vweird.f32 %v1592
        %vm1599 = vmor %vm1597, %vm1598
        %v1600 = vsel %vm1599, %v1592, %v1596
        %v1601 = vand.u32 2147483647, %v1357
        %vm1602 = vcmp.eq.f32.partialorder %v1601, 8.507059e+37
        %v1603 = vand.u32 %v1357, 2147483648
        %v1604 = vor.u32 1.1754944e-38, %v1603
        %v1605 = vsel %vm1602, %v1604, %v1600
        %v1606 = vrcp.pop %v1359
        %v1607 = vmul.f32 %v1359, %v1606
        %v1608 = vsub.f32 1.0, %v1607
        %v1609 = vmul.f32 %v1606, %v1608
        %v1610 = vadd.f32 %v1606, %v1609
        %vm1611 = vweird.f32 %v1359
        %vm1612 = vweird.f32 %v1606
        %vm1613 = vmor %vm1611, %vm1612
        %v1614 = vsel %vm1613, %v1606, %v1610
        %v1615 = vand.u32 2147483647, %v1359
        %vm1616 = vcmp.eq.f32.partialorder %v1615, 8.507059e+37
        %v1617 = vand.u32 %v1359, 2147483648
        %v1618 = vor.u32 1.1754944e-38, %v1617
        %v1619 = vsel %vm1616, %v1618, %v1614
        %v1620 = vrcp.pop %v1361
        %v1621 = vmul.f32 %v1361, %v1620
        %v1622 = vsub.f32 1.0, %v1621
        %v1623 = vmul.f32 %v1620, %v1622
        %v1624 = vadd.f32 %v1620, %v1623
        %vm1625 = vweird.f32 %v1361
        %vm1626 = vweird.f32 %v1620
        %vm1627 = vmor %vm1625, %vm1626
        %v1628 = vsel %vm1627, %v1620, %v1624
        %v1629 = vand.u32 2147483647, %v1361
        %vm1630 = vcmp.eq.f32.partialorder %v1629, 8.507059e+37
        %v1631 = vand.u32 %v1361, 2147483648
        %v1632 = vor.u32 1.1754944e-38, %v1631
        %v1633 = vsel %vm1630, %v1632, %v1628
        %v1634 = vrcp.pop %v1363
        %v1635 = vmul.f32 %v1363, %v1634
        %v1636 = vsub.f32 1.0, %v1635
        %v1637 = vmul.f32 %v1634, %v1636
        %v1638 = vadd.f32 %v1634, %v1637
        %vm1639 = vweird.f32 %v1363
        %vm1640 = vweird.f32 %v1634
        %vm1641 = vmor %vm1639, %vm1640
        %v1642 = vsel %vm1641, %v1634, %v1638
        %v1643 = vand.u32 2147483647, %v1363
        %vm1644 = vcmp.eq.f32.partialorder %v1643, 8.507059e+37
        %v1645 = vand.u32 %v1363, 2147483648
        %v1646 = vor.u32 1.1754944e-38, %v1645
        %v1647 = vsel %vm1644, %v1646, %v1642
        %v1648 = vrcp.pop %v1365
        %v1649 = vmul.f32 %v1365, %v1648
        %v1650 = vsub.f32 1.0, %v1649
        %v1651 = vmul.f32 %v1648, %v1650
        %v1652 = vadd.f32 %v1648, %v1651
        %vm1653 = vweird.f32 %v1365
        %vm1654 = vweird.f32 %v1648
        %vm1655 = vmor %vm1653, %vm1654
        %v1656 = vsel %vm1655, %v1648, %v1652
        %v1657 = vand.u32 2147483647, %v1365
        %vm1658 = vcmp.eq.f32.partialorder %v1657, 8.507059e+37
        %v1659 = vand.u32 %v1365, 2147483648
        %v1660 = vor.u32 1.1754944e-38, %v1659
        %v1661 = vsel %vm1658, %v1660, %v1656
        %v1662 = vrcp.pop %v1367
        %v1663 = vmul.f32 %v1367, %v1662
        %v1664 = vsub.f32 1.0, %v1663
        %v1665 = vmul.f32 %v1662, %v1664
        %v1666 = vadd.f32 %v1662, %v1665
        %vm1667 = vweird.f32 %v1367
        %vm1668 = vweird.f32 %v1662
        %vm1669 = vmor %vm1667, %vm1668
        %v1670 = vsel %vm1669, %v1662, %v1666
        %v1671 = vand.u32 2147483647, %v1367
        %vm1672 = vcmp.eq.f32.partialorder %v1671, 8.507059e+37
        %v1673 = vand.u32 %v1367, 2147483648
        %v1674 = vor.u32 1.1754944e-38, %v1673
        %v1675 = vsel %vm1672, %v1674, %v1670
        %v1676 = vrcp.pop %v1369
        %v1677 = vmul.f32 %v1369, %v1676
        %v1678 = vsub.f32 1.0, %v1677
        %v1679 = vmul.f32 %v1676, %v1678
        %v1680 = vadd.f32 %v1676, %v1679
        %vm1681 = vweird.f32 %v1369
        %vm1682 = vweird.f32 %v1676
        %vm1683 = vmor %vm1681, %vm1682
        %v1684 = vsel %vm1683, %v1676, %v1680
        %v1685 = vand.u32 2147483647, %v1369
        %vm1686 = vcmp.eq.f32.partialorder %v1685, 8.507059e+37
        %v1687 = vand.u32 %v1369, 2147483648
        %v1688 = vor.u32 1.1754944e-38, %v1687
        %v1689 = vsel %vm1686, %v1688, %v1684
        %v1690 = vrcp.pop %v1371
        %v1691 = vmul.f32 %v1371, %v1690
        %v1692 = vsub.f32 1.0, %v1691
        %v1693 = vmul.f32 %v1690, %v1692
        %v1694 = vadd.f32 %v1690, %v1693
        %vm1695 = vweird.f32 %v1371
        %vm1696 = vweird.f32 %v1690
        %vm1697 = vmor %vm1695, %vm1696
        %v1698 = vsel %vm1697, %v1690, %v1694
        %v1699 = vand.u32 2147483647, %v1371
        %vm1700 = vcmp.eq.f32.partialorder %v1699, 8.507059e+37
        %v1701 = vand.u32 %v1371, 2147483648
        %v1702 = vor.u32 1.1754944e-38, %v1701
        %v1703 = vsel %vm1700, %v1702, %v1698
        %v1704 = vrcp.pop %v1373
        %v1705 = vmul.f32 %v1373, %v1704
        %v1706 = vsub.f32 1.0, %v1705
        %v1707 = vmul.f32 %v1704, %v1706
        %v1708 = vadd.f32 %v1704, %v1707
        %vm1709 = vweird.f32 %v1373
        %vm1710 = vweird.f32 %v1704
        %vm1711 = vmor %vm1709, %vm1710
        %v1712 = vsel %vm1711, %v1704, %v1708
        %v1713 = vand.u32 2147483647, %v1373
        %vm1714 = vcmp.eq.f32.partialorder %v1713, 8.507059e+37
        %v1715 = vand.u32 %v1373, 2147483648
        %v1716 = vor.u32 1.1754944e-38, %v1715
        %v1717 = vsel %vm1714, %v1716, %v1712
        %v1718 = vrcp.pop %v1375
        %v1719 = vmul.f32 %v1375, %v1718
        %v1720 = vsub.f32 1.0, %v1719
        %v1721 = vmul.f32 %v1718, %v1720
        %v1722 = vadd.f32 %v1718, %v1721
        %vm1723 = vweird.f32 %v1375
        %vm1724 = vweird.f32 %v1718
        %vm1725 = vmor %vm1723, %vm1724
        %v1726 = vsel %vm1725, %v1718, %v1722
        %v1727 = vand.u32 2147483647, %v1375
        %vm1728 = vcmp.eq.f32.partialorder %v1727, 8.507059e+37
        %v1729 = vand.u32 %v1375, 2147483648
        %v1730 = vor.u32 1.1754944e-38, %v1729
        %v1731 = vsel %vm1728, %v1730, %v1726
        %v1732 = vrcp.pop %v1377
        %v1733 = vmul.f32 %v1377, %v1732
        %v1734 = vsub.f32 1.0, %v1733
        %v1735 = vmul.f32 %v1732, %v1734
        %v1736 = vadd.f32 %v1732, %v1735
        %vm1737 = vweird.f32 %v1377
        %vm1738 = vweird.f32 %v1732
        %vm1739 = vmor %vm1737, %vm1738
        %v1740 = vsel %vm1739, %v1732, %v1736
        %v1741 = vand.u32 2147483647, %v1377
        %vm1742 = vcmp.eq.f32.partialorder %v1741, 8.507059e+37
        %v1743 = vand.u32 %v1377, 2147483648
        %v1744 = vor.u32 1.1754944e-38, %v1743
        %v1745 = vsel %vm1742, %v1744, %v1740
        %v1746 = vrcp.pop %v1379
        %v1747 = vmul.f32 %v1379, %v1746
        %v1748 = vsub.f32 1.0, %v1747
        %v1749 = vmul.f32 %v1746, %v1748
        %v1750 = vadd.f32 %v1746, %v1749
        %vm1751 = vweird.f32 %v1379
        %vm1752 = vweird.f32 %v1746
        %vm1753 = vmor %vm1751, %vm1752
        %v1754 = vsel %vm1753, %v1746, %v1750
        %v1755 = vand.u32 2147483647, %v1379
        %vm1756 = vcmp.eq.f32.partialorder %v1755, 8.507059e+37
        %v1757 = vand.u32 %v1379, 2147483648
        %v1758 = vor.u32 1.1754944e-38, %v1757
        %v1759 = vsel %vm1756, %v1758, %v1754
        %v1760 = vrcp.pop %v1381
        %v1761 = vmul.f32 %v1381, %v1760
        %v1762 = vsub.f32 1.0, %v1761
        %v1763 = vmul.f32 %v1760, %v1762
        %v1764 = vadd.f32 %v1760, %v1763
        %vm1765 = vweird.f32 %v1381
        %vm1766 = vweird.f32 %v1760
        %vm1767 = vmor %vm1765, %vm1766
        %v1768 = vsel %vm1767, %v1760, %v1764
        %v1769 = vand.u32 2147483647, %v1381
        %vm1770 = vcmp.eq.f32.partialorder %v1769, 8.507059e+37
        %v1771 = vand.u32 %v1381, 2147483648
        %v1772 = vor.u32 1.1754944e-38, %v1771
        %v1773 = vsel %vm1770, %v1772, %v1768
        %v1774 = vrcp.pop %v1383
        %v1775 = vmul.f32 %v1383, %v1774
        %v1776 = vsub.f32 1.0, %v1775
        %v1777 = vmul.f32 %v1774, %v1776
        %v1778 = vadd.f32 %v1774, %v1777
        %vm1779 = vweird.f32 %v1383
        %vm1780 = vweird.f32 %v1774
        %vm1781 = vmor %vm1779, %vm1780
        %v1782 = vsel %vm1781, %v1774, %v1778
        %v1783 = vand.u32 2147483647, %v1383
        %vm1784 = vcmp.eq.f32.partialorder %v1783, 8.507059e+37
        %v1785 = vand.u32 %v1383, 2147483648
        %v1786 = vor.u32 1.1754944e-38, %v1785
        %v1787 = vsel %vm1784, %v1786, %v1782
        %v1788 = vrcp.pop %v1385
        %v1789 = vmul.f32 %v1385, %v1788
        %v1790 = vsub.f32 1.0, %v1789
        %v1791 = vmul.f32 %v1788, %v1790
        %v1792 = vadd.f32 %v1788, %v1791
        %vm1793 = vweird.f32 %v1385
        %vm1794 = vweird.f32 %v1788
        %vm1795 = vmor %vm1793, %vm1794
        %v1796 = vsel %vm1795, %v1788, %v1792
        %v1797 = vand.u32 2147483647, %v1385
        %vm1798 = vcmp.eq.f32.partialorder %v1797, 8.507059e+37
        %v1799 = vand.u32 %v1385, 2147483648
        %v1800 = vor.u32 1.1754944e-38, %v1799
        %v1801 = vsel %vm1798, %v1800, %v1796
        %v1802 = vrcp.pop %v1387
        %v1803 = vmul.f32 %v1387, %v1802
        %v1804 = vsub.f32 1.0, %v1803
        %v1805 = vmul.f32 %v1802, %v1804
        %v1806 = vadd.f32 %v1802, %v1805
        %vm1807 = vweird.f32 %v1387
        %vm1808 = vweird.f32 %v1802
        %vm1809 = vmor %vm1807, %vm1808
        %v1810 = vsel %vm1809, %v1802, %v1806
        %v1811 = vand.u32 2147483647, %v1387
        %vm1812 = vcmp.eq.f32.partialorder %v1811, 8.507059e+37
        %v1813 = vand.u32 %v1387, 2147483648
        %v1814 = vor.u32 1.1754944e-38, %v1813
        %v1815 = vsel %vm1812, %v1814, %v1810
        %v1816 = vrcp.pop %v1389
        %v1817 = vmul.f32 %v1389, %v1816
        %v1818 = vsub.f32 1.0, %v1817
        %v1819 = vmul.f32 %v1816, %v1818
        %v1820 = vadd.f32 %v1816, %v1819
        %vm1821 = vweird.f32 %v1389
        %vm1822 = vweird.f32 %v1816
        %vm1823 = vmor %vm1821, %vm1822
        %v1824 = vsel %vm1823, %v1816, %v1820
        %v1825 = vand.u32 2147483647, %v1389
        %vm1826 = vcmp.eq.f32.partialorder %v1825, 8.507059e+37
        %v1827 = vand.u32 %v1389, 2147483648
        %v1828 = vor.u32 1.1754944e-38, %v1827
        %v1829 = vsel %vm1826, %v1828, %v1824
        %v1830 = vrcp.pop %v1391
        %v1831 = vmul.f32 %v1391, %v1830
        %v1832 = vsub.f32 1.0, %v1831
        %v1833 = vmul.f32 %v1830, %v1832
        %v1834 = vadd.f32 %v1830, %v1833
        %vm1835 = vweird.f32 %v1391
        %vm1836 = vweird.f32 %v1830
        %vm1837 = vmor %vm1835, %vm1836
        %v1838 = vsel %vm1837, %v1830, %v1834
        %v1839 = vand.u32 2147483647, %v1391
        %vm1840 = vcmp.eq.f32.partialorder %v1839, 8.507059e+37
        %v1841 = vand.u32 %v1391, 2147483648
        %v1842 = vor.u32 1.1754944e-38, %v1841
        %v1843 = vsel %vm1840, %v1842, %v1838
        %v1844 = vrcp.pop %v1393
        %v1845 = vmul.f32 %v1393, %v1844
        %v1846 = vsub.f32 1.0, %v1845
        %v1847 = vmul.f32 %v1844, %v1846
        %v1848 = vadd.f32 %v1844, %v1847
        %vm1849 = vweird.f32 %v1393
        %vm1850 = vweird.f32 %v1844
        %vm1851 = vmor %vm1849, %vm1850
        %v1852 = vsel %vm1851, %v1844, %v1848
        %v1853 = vand.u32 2147483647, %v1393
        %vm1854 = vcmp.eq.f32.partialorder %v1853, 8.507059e+37
        %v1855 = vand.u32 %v1393, 2147483648
        %v1856 = vor.u32 1.1754944e-38, %v1855
        %v1857 = vsel %vm1854, %v1856, %v1852
        %v1858 = vrcp.pop %v1395
        %v1859 = vmul.f32 %v1395, %v1858
        %v1860 = vsub.f32 1.0, %v1859
        %v1861 = vmul.f32 %v1858, %v1860
        %v1862 = vadd.f32 %v1858, %v1861
        %vm1863 = vweird.f32 %v1395
        %vm1864 = vweird.f32 %v1858
        %vm1865 = vmor %vm1863, %vm1864
        %v1866 = vsel %vm1865, %v1858, %v1862
        %v1867 = vand.u32 2147483647, %v1395
        %vm1868 = vcmp.eq.f32.partialorder %v1867, 8.507059e+37
        %v1869 = vand.u32 %v1395, 2147483648
        %v1870 = vor.u32 1.1754944e-38, %v1869
        %v1871 = vsel %vm1868, %v1870, %v1866
        %v1872 = vrcp.pop %v1397
        %v1873 = vmul.f32 %v1397, %v1872
        %v1874 = vsub.f32 1.0, %v1873
        %v1875 = vmul.f32 %v1872, %v1874
        %v1876 = vadd.f32 %v1872, %v1875
        %vm1877 = vweird.f32 %v1397
        %vm1878 = vweird.f32 %v1872
        %vm1879 = vmor %vm1877, %vm1878
        %v1880 = vsel %vm1879, %v1872, %v1876
        %v1881 = vand.u32 2147483647, %v1397
        %vm1882 = vcmp.eq.f32.partialorder %v1881, 8.507059e+37
        %v1883 = vand.u32 %v1397, 2147483648
        %v1884 = vor.u32 1.1754944e-38, %v1883
        %v1885 = vsel %vm1882, %v1884, %v1880
        %v1886 = vrcp.pop %v1399
        %v1887 = vmul.f32 %v1399, %v1886
        %v1888 = vsub.f32 1.0, %v1887
        %v1889 = vmul.f32 %v1886, %v1888
        %v1890 = vadd.f32 %v1886, %v1889
        %vm1891 = vweird.f32 %v1399
        %vm1892 = vweird.f32 %v1886
        %vm1893 = vmor %vm1891, %vm1892
        %v1894 = vsel %vm1893, %v1886, %v1890
        %v1895 = vand.u32 2147483647, %v1399
        %vm1896 = vcmp.eq.f32.partialorder %v1895, 8.507059e+37
        %v1897 = vand.u32 %v1399, 2147483648
        %v1898 = vor.u32 1.1754944e-38, %v1897
        %v1899 = vsel %vm1896, %v1898, %v1894
        %v1900 = vrcp.pop %v1401
        %v1901 = vmul.f32 %v1401, %v1900
        %v1902 = vsub.f32 1.0, %v1901
        %v1903 = vmul.f32 %v1900, %v1902
        %v1904 = vadd.f32 %v1900, %v1903
        %vm1905 = vweird.f32 %v1401
        %vm1906 = vweird.f32 %v1900
        %vm1907 = vmor %vm1905, %vm1906
        %v1908 = vsel %vm1907, %v1900, %v1904
        %v1909 = vand.u32 2147483647, %v1401
        %vm1910 = vcmp.eq.f32.partialorder %v1909, 8.507059e+37
        %v1911 = vand.u32 %v1401, 2147483648
        %v1912 = vor.u32 1.1754944e-38, %v1911
        %v1913 = vsel %vm1910, %v1912, %v1908
        %v1914 = vrcp.pop %v1403
        %v1915 = vmul.f32 %v1403, %v1914
        %v1916 = vsub.f32 1.0, %v1915
        %v1917 = vmul.f32 %v1914, %v1916
        %v1918 = vadd.f32 %v1914, %v1917
        %vm1919 = vweird.f32 %v1403
        %vm1920 = vweird.f32 %v1914
        %vm1921 = vmor %vm1919, %vm1920
        %v1922 = vsel %vm1921, %v1914, %v1918
        %v1923 = vand.u32 2147483647, %v1403
        %vm1924 = vcmp.eq.f32.partialorder %v1923, 8.507059e+37
        %v1925 = vand.u32 %v1403, 2147483648
        %v1926 = vor.u32 1.1754944e-38, %v1925
        %v1927 = vsel %vm1924, %v1926, %v1922
        %v1928 = vrcp.pop %v1405
        %v1929 = vmul.f32 %v1405, %v1928
        %v1930 = vsub.f32 1.0, %v1929
        %v1931 = vmul.f32 %v1928, %v1930
        %v1932 = vadd.f32 %v1928, %v1931
        %vm1933 = vweird.f32 %v1405
        %vm1934 = vweird.f32 %v1928
        %vm1935 = vmor %vm1933, %vm1934
        %v1936 = vsel %vm1935, %v1928, %v1932
        %v1937 = vand.u32 2147483647, %v1405
        %vm1938 = vcmp.eq.f32.partialorder %v1937, 8.507059e+37
        %v1939 = vand.u32 %v1405, 2147483648
        %v1940 = vor.u32 1.1754944e-38, %v1939
        %v1941 = vsel %vm1938, %v1940, %v1936
        %v1942 = vrcp.pop %v1407
        %v1943 = vmul.f32 %v1407, %v1942
        %v1944 = vsub.f32 1.0, %v1943
        %v1945 = vmul.f32 %v1942, %v1944
        %v1946 = vadd.f32 %v1942, %v1945
        %vm1947 = vweird.f32 %v1407
        %vm1948 = vweird.f32 %v1942
        %vm1949 = vmor %vm1947, %vm1948
        %v1950 = vsel %vm1949, %v1942, %v1946
        %v1951 = vand.u32 2147483647, %v1407
        %vm1952 = vcmp.eq.f32.partialorder %v1951, 8.507059e+37
        %v1953 = vand.u32 %v1407, 2147483648
        %v1954 = vor.u32 1.1754944e-38, %v1953
        %v1955 = vsel %vm1952, %v1954, %v1950
        %v1956 = vrcp.pop %v1409
        %v1957 = vmul.f32 %v1409, %v1956
        %v1958 = vsub.f32 1.0, %v1957
        %v1959 = vmul.f32 %v1956, %v1958
        %v1960 = vadd.f32 %v1956, %v1959
        %vm1961 = vweird.f32 %v1409
        %vm1962 = vweird.f32 %v1956
        %vm1963 = vmor %vm1961, %vm1962
        %v1964 = vsel %vm1963, %v1956, %v1960
        %v1965 = vand.u32 2147483647, %v1409
        %vm1966 = vcmp.eq.f32.partialorder %v1965, 8.507059e+37
        %v1967 = vand.u32 %v1409, 2147483648
        %v1968 = vor.u32 1.1754944e-38, %v1967
        %v1969 = vsel %vm1966, %v1968, %v1964
        %v1970 = vrcp.pop %v1411
        %v1971 = vmul.f32 %v1411, %v1970
        %v1972 = vsub.f32 1.0, %v1971
        %v1973 = vmul.f32 %v1970, %v1972
        %v1974 = vadd.f32 %v1970, %v1973
        %vm1975 = vweird.f32 %v1411
        %vm1976 = vweird.f32 %v1970
        %vm1977 = vmor %vm1975, %vm1976
        %v1978 = vsel %vm1977, %v1970, %v1974
        %v1979 = vand.u32 2147483647, %v1411
        %vm1980 = vcmp.eq.f32.partialorder %v1979, 8.507059e+37
        %v1981 = vand.u32 %v1411, 2147483648
        %v1982 = vor.u32 1.1754944e-38, %v1981
        %v1983 = vsel %vm1980, %v1982, %v1978
        %v1984 = vrcp.pop %v1413
        %v1985 = vmul.f32 %v1413, %v1984
        %v1986 = vsub.f32 1.0, %v1985
        %v1987 = vmul.f32 %v1984, %v1986
        %v1988 = vadd.f32 %v1984, %v1987
        %vm1989 = vweird.f32 %v1413
        %vm1990 = vweird.f32 %v1984
        %vm1991 = vmor %vm1989, %vm1990
        %v1992 = vsel %vm1991, %v1984, %v1988
        %v1993 = vand.u32 2147483647, %v1413
        %vm1994 = vcmp.eq.f32.partialorder %v1993, 8.507059e+37
        %v1995 = vand.u32 %v1413, 2147483648
        %v1996 = vor.u32 1.1754944e-38, %v1995
        %v1997 = vsel %vm1994, %v1996, %v1992
        %v1998 = vrcp.pop %v1415
        %v1999 = vmul.f32 %v1415, %v1998
        %v2000 = vsub.f32 1.0, %v1999
        %v2001 = vmul.f32 %v1998, %v2000
        %v2002 = vadd.f32 %v1998, %v2001
        %vm2003 = vweird.f32 %v1415
        %vm2004 = vweird.f32 %v1998
        %vm2005 = vmor %vm2003, %vm2004
        %v2006 = vsel %vm2005, %v1998, %v2002
        %v2007 = vand.u32 2147483647, %v1415
        %vm2008 = vcmp.eq.f32.partialorder %v2007, 8.507059e+37
        %v2009 = vand.u32 %v1415, 2147483648
        %v2010 = vor.u32 1.1754944e-38, %v2009
        %v2011 = vsel %vm2008, %v2010, %v2006
        %v2012 = vrcp.pop %v1417
        %v2013 = vmul.f32 %v1417, %v2012
        %v2014 = vsub.f32 1.0, %v2013
        %v2015 = vmul.f32 %v2012, %v2014
        %v2016 = vadd.f32 %v2012, %v2015
        %vm2017 = vweird.f32 %v1417
        %vm2018 = vweird.f32 %v2012
        %vm2019 = vmor %vm2017, %vm2018
        %v2020 = vsel %vm2019, %v2012, %v2016
        %v2021 = vand.u32 2147483647, %v1417
        %vm2022 = vcmp.eq.f32.partialorder %v2021, 8.507059e+37
        %v2023 = vand.u32 %v1417, 2147483648
        %v2024 = vor.u32 1.1754944e-38, %v2023
        %v2025 = vsel %vm2022, %v2024, %v2020
        %v2026 = vrcp.pop %v1419
        %v2027 = vmul.f32 %v1419, %v2026
        %v2028 = vsub.f32 1.0, %v2027
        %v2029 = vmul.f32 %v2026, %v2028
        %v2030 = vadd.f32 %v2026, %v2029
        %vm2031 = vweird.f32 %v1419
        %vm2032 = vweird.f32 %v2026
        %vm2033 = vmor %vm2031, %vm2032
        %v2034 = vsel %vm2033, %v2026, %v2030
        %v2035 = vand.u32 2147483647, %v1419
        %vm2036 = vcmp.eq.f32.partialorder %v2035, 8.507059e+37
        %v2037 = vand.u32 %v1419, 2147483648
        %v2038 = vor.u32 1.1754944e-38, %v2037
        %v2039 = vsel %vm2036, %v2038, %v2034
        %v2040 = vrcp.pop %v1421
        %v2041 = vmul.f32 %v1421, %v2040
        %v2042 = vsub.f32 1.0, %v2041
        %v2043 = vmul.f32 %v2040, %v2042
        %v2044 = vadd.f32 %v2040, %v2043
        %vm2045 = vweird.f32 %v1421
        %vm2046 = vweird.f32 %v2040
        %vm2047 = vmor %vm2045, %vm2046
        %v2048 = vsel %vm2047, %v2040, %v2044
        %v2049 = vand.u32 2147483647, %v1421
        %vm2050 = vcmp.eq.f32.partialorder %v2049, 8.507059e+37
        %v2051 = vand.u32 %v1421, 2147483648
        %v2052 = vor.u32 1.1754944e-38, %v2051
        %v2053 = vsel %vm2050, %v2052, %v2048
        %v2054 = vrcp.pop %v1423
        %v2055 = vmul.f32 %v1423, %v2054
        %v2056 = vsub.f32 1.0, %v2055
        %v2057 = vmul.f32 %v2054, %v2056
        %v2058 = vadd.f32 %v2054, %v2057
        %vm2059 = vweird.f32 %v1423
        %vm2060 = vweird.f32 %v2054
        %vm2061 = vmor %vm2059, %vm2060
        %v2062 = vsel %vm2061, %v2054, %v2058
        %v2063 = vand.u32 2147483647, %v1423
        %vm2064 = vcmp.eq.f32.partialorder %v2063, 8.507059e+37
        %v2065 = vand.u32 %v1423, 2147483648
        %v2066 = vor.u32 1.1754944e-38, %v2065
        %v2067 = vsel %vm2064, %v2066, %v2062
        %v2068 = vrcp.pop %v1425
        %v2069 = vmul.f32 %v1425, %v2068
        %v2070 = vsub.f32 1.0, %v2069
        %v2071 = vmul.f32 %v2068, %v2070
        %v2072 = vadd.f32 %v2068, %v2071
        %vm2073 = vweird.f32 %v1425
        %vm2074 = vweird.f32 %v2068
        %vm2075 = vmor %vm2073, %vm2074
        %v2076 = vsel %vm2075, %v2068, %v2072
        %v2077 = vand.u32 2147483647, %v1425
        %vm2078 = vcmp.eq.f32.partialorder %v2077, 8.507059e+37
        %v2079 = vand.u32 %v1425, 2147483648
        %v2080 = vor.u32 1.1754944e-38, %v2079
        %v2081 = vsel %vm2078, %v2080, %v2076
        %v2082 = vrcp.pop %v1427
        %v2083 = vmul.f32 %v1427, %v2082
        %v2084 = vsub.f32 1.0, %v2083
        %v2085 = vmul.f32 %v2082, %v2084
        %v2086 = vadd.f32 %v2082, %v2085
        %vm2087 = vweird.f32 %v1427
        %vm2088 = vweird.f32 %v2082
        %vm2089 = vmor %vm2087, %vm2088
        %v2090 = vsel %vm2089, %v2082, %v2086
        %v2091 = vand.u32 2147483647, %v1427
        %vm2092 = vcmp.eq.f32.partialorder %v2091, 8.507059e+37
        %v2093 = vand.u32 %v1427, 2147483648
        %v2094 = vor.u32 1.1754944e-38, %v2093
        %v2095 = vsel %vm2092, %v2094, %v2090
        %v2096 = vrcp.pop %v1429
        %v2097 = vmul.f32 %v1429, %v2096
        %v2098 = vsub.f32 1.0, %v2097
        %v2099 = vmul.f32 %v2096, %v2098
        %v2100 = vadd.f32 %v2096, %v2099
        %vm2101 = vweird.f32 %v1429
        %vm2102 = vweird.f32 %v2096
        %vm2103 = vmor %vm2101, %vm2102
        %v2104 = vsel %vm2103, %v2096, %v2100
        %v2105 = vand.u32 2147483647, %v1429
        %vm2106 = vcmp.eq.f32.partialorder %v2105, 8.507059e+37
        %v2107 = vand.u32 %v1429, 2147483648
        %v2108 = vor.u32 1.1754944e-38, %v2107
        %v2109 = vsel %vm2106, %v2108, %v2104
        %v2110 = vrcp.pop %v1431
        %v2111 = vmul.f32 %v1431, %v2110
        %v2112 = vsub.f32 1.0, %v2111
        %v2113 = vmul.f32 %v2110, %v2112
        %v2114 = vadd.f32 %v2110, %v2113
        %vm2115 = vweird.f32 %v1431
        %vm2116 = vweird.f32 %v2110
        %vm2117 = vmor %vm2115, %vm2116
        %v2118 = vsel %vm2117, %v2110, %v2114
        %v2119 = vand.u32 2147483647, %v1431
        %vm2120 = vcmp.eq.f32.partialorder %v2119, 8.507059e+37
        %v2121 = vand.u32 %v1431, 2147483648
        %v2122 = vor.u32 1.1754944e-38, %v2121
        %v2123 = vsel %vm2120, %v2122, %v2118
        %v2124 = vrcp.pop %v1433
        %v2125 = vmul.f32 %v1433, %v2124
        %v2126 = vsub.f32 1.0, %v2125
        %v2127 = vmul.f32 %v2124, %v2126
        %v2128 = vadd.f32 %v2124, %v2127
        %vm2129 = vweird.f32 %v1433
        %vm2130 = vweird.f32 %v2124
        %vm2131 = vmor %vm2129, %vm2130
        %v2132 = vsel %vm2131, %v2124, %v2128
        %v2133 = vand.u32 2147483647, %v1433
        %vm2134 = vcmp.eq.f32.partialorder %v2133, 8.507059e+37
        %v2135 = vand.u32 %v1433, 2147483648
        %v2136 = vor.u32 1.1754944e-38, %v2135
        %v2137 = vsel %vm2134, %v2136, %v2132
        %v2138 = vrcp.pop %v1435
        %v2139 = vmul.f32 %v1435, %v2138
        %v2140 = vsub.f32 1.0, %v2139
        %v2141 = vmul.f32 %v2138, %v2140
        %v2142 = vadd.f32 %v2138, %v2141
        %vm2143 = vweird.f32 %v1435
        %vm2144 = vweird.f32 %v2138
        %vm2145 = vmor %vm2143, %vm2144
        %v2146 = vsel %vm2145, %v2138, %v2142
        %v2147 = vand.u32 2147483647, %v1435
        %vm2148 = vcmp.eq.f32.partialorder %v2147, 8.507059e+37
        %v2149 = vand.u32 %v1435, 2147483648
        %v2150 = vor.u32 1.1754944e-38, %v2149
        %v2151 = vsel %vm2148, %v2150, %v2146
        %v2152 = vrcp.pop %v1437
        %v2153 = vmul.f32 %v1437, %v2152
        %v2154 = vsub.f32 1.0, %v2153
        %v2155 = vmul.f32 %v2152, %v2154
        %v2156 = vadd.f32 %v2152, %v2155
        %vm2157 = vweird.f32 %v1437
        %vm2158 = vweird.f32 %v2152
        %vm2159 = vmor %vm2157, %vm2158
        %v2160 = vsel %vm2159, %v2152, %v2156
        %v2161 = vand.u32 2147483647, %v1437
        %vm2162 = vcmp.eq.f32.partialorder %v2161, 8.507059e+37
        %v2163 = vand.u32 %v1437, 2147483648
        %v2164 = vor.u32 1.1754944e-38, %v2163
        %v2165 = vsel %vm2162, %v2164, %v2160
        %v2166 = vrcp.pop %v1439
        %v2167 = vmul.f32 %v1439, %v2166
        %v2168 = vsub.f32 1.0, %v2167
        %v2169 = vmul.f32 %v2166, %v2168
        %v2170 = vadd.f32 %v2166, %v2169
        %vm2171 = vweird.f32 %v1439
        %vm2172 = vweird.f32 %v2166
        %vm2173 = vmor %vm2171, %vm2172
        %v2174 = vsel %vm2173, %v2166, %v2170
        %v2175 = vand.u32 2147483647, %v1439
        %vm2176 = vcmp.eq.f32.partialorder %v2175, 8.507059e+37
        %v2177 = vand.u32 %v1439, 2147483648
        %v2178 = vor.u32 1.1754944e-38, %v2177
        %v2179 = vsel %vm2176, %v2178, %v2174
        %v2180 = vrcp.pop %v1441
        %v2181 = vmul.f32 %v1441, %v2180
        %v2182 = vsub.f32 1.0, %v2181
        %v2183 = vmul.f32 %v2180, %v2182
        %v2184 = vadd.f32 %v2180, %v2183
        %vm2185 = vweird.f32 %v1441
        %vm2186 = vweird.f32 %v2180
        %vm2187 = vmor %vm2185, %vm2186
        %v2188 = vsel %vm2187, %v2180, %v2184
        %v2189 = vand.u32 2147483647, %v1441
        %vm2190 = vcmp.eq.f32.partialorder %v2189, 8.507059e+37
        %v2191 = vand.u32 %v1441, 2147483648
        %v2192 = vor.u32 1.1754944e-38, %v2191
        %v2193 = vsel %vm2190, %v2192, %v2188
        %v2194 = vrcp.pop %v1443
        %v2195 = vmul.f32 %v1443, %v2194
        %v2196 = vsub.f32 1.0, %v2195
        %v2197 = vmul.f32 %v2194, %v2196
        %v2198 = vadd.f32 %v2194, %v2197
        %vm2199 = vweird.f32 %v1443
        %vm2200 = vweird.f32 %v2194
        %vm2201 = vmor %vm2199, %vm2200
        %v2202 = vsel %vm2201, %v2194, %v2198
        %v2203 = vand.u32 2147483647, %v1443
        %vm2204 = vcmp.eq.f32.partialorder %v2203, 8.507059e+37
        %v2205 = vand.u32 %v1443, 2147483648
        %v2206 = vor.u32 1.1754944e-38, %v2205
        %v2207 = vsel %vm2204, %v2206, %v2202
        %v2208 = vrcp.pop %v1445
        %v2209 = vmul.f32 %v1445, %v2208
        %v2210 = vsub.f32 1.0, %v2209
        %v2211 = vmul.f32 %v2208, %v2210
        %v2212 = vadd.f32 %v2208, %v2211
        %vm2213 = vweird.f32 %v1445
        %vm2214 = vweird.f32 %v2208
        %vm2215 = vmor %vm2213, %vm2214
        %v2216 = vsel %vm2215, %v2208, %v2212
        %v2217 = vand.u32 2147483647, %v1445
        %vm2218 = vcmp.eq.f32.partialorder %v2217, 8.507059e+37
        %v2219 = vand.u32 %v1445, 2147483648
        %v2220 = vor.u32 1.1754944e-38, %v2219
        %v2221 = vsel %vm2218, %v2220, %v2216
        %v2222 = vrcp.pop %v1447
        %v2223 = vmul.f32 %v1447, %v2222
        %v2224 = vsub.f32 1.0, %v2223
        %v2225 = vmul.f32 %v2222, %v2224
        %v2226 = vadd.f32 %v2222, %v2225
        %vm2227 = vweird.f32 %v1447
        %vm2228 = vweird.f32 %v2222
        %vm2229 = vmor %vm2227, %vm2228
        %v2230 = vsel %vm2229, %v2222, %v2226
        %v2231 = vand.u32 2147483647, %v1447
        %vm2232 = vcmp.eq.f32.partialorder %v2231, 8.507059e+37
        %v2233 = vand.u32 %v1447, 2147483648
        %v2234 = vor.u32 1.1754944e-38, %v2233
        %v2235 = vsel %vm2232, %v2234, %v2230
        %v2236 = vrcp.pop %v1449
        %v2237 = vmul.f32 %v1449, %v2236
        %v2238 = vsub.f32 1.0, %v2237
        %v2239 = vmul.f32 %v2236, %v2238
        %v2240 = vadd.f32 %v2236, %v2239
        %vm2241 = vweird.f32 %v1449
        %vm2242 = vweird.f32 %v2236
        %vm2243 = vmor %vm2241, %vm2242
        %v2244 = vsel %vm2243, %v2236, %v2240
        %v2245 = vand.u32 2147483647, %v1449
        %vm2246 = vcmp.eq.f32.partialorder %v2245, 8.507059e+37
        %v2247 = vand.u32 %v1449, 2147483648
        %v2248 = vor.u32 1.1754944e-38, %v2247
        %v2249 = vsel %vm2246, %v2248, %v2244
        %v2250 = vrcp.pop %v1451
        %v2251 = vmul.f32 %v1451, %v2250
        %v2252 = vsub.f32 1.0, %v2251
        %v2253 = vmul.f32 %v2250, %v2252
        %v2254 = vadd.f32 %v2250, %v2253
        %vm2255 = vweird.f32 %v1451
        %vm2256 = vweird.f32 %v2250
        %vm2257 = vmor %vm2255, %vm2256
        %v2258 = vsel %vm2257, %v2250, %v2254
        %v2259 = vand.u32 2147483647, %v1451
        %vm2260 = vcmp.eq.f32.partialorder %v2259, 8.507059e+37
        %v2261 = vand.u32 %v1451, 2147483648
        %v2262 = vor.u32 1.1754944e-38, %v2261
        %v2263 = vsel %vm2260, %v2262, %v2258
        %v2264 = vrcp.pop %v1453
        %v2265 = vmul.f32 %v1453, %v2264
        %v2266 = vsub.f32 1.0, %v2265
        %v2267 = vmul.f32 %v2264, %v2266
        %v2268 = vadd.f32 %v2264, %v2267
        %vm2269 = vweird.f32 %v1453
        %vm2270 = vweird.f32 %v2264
        %vm2271 = vmor %vm2269, %vm2270
        %v2272 = vsel %vm2271, %v2264, %v2268
        %v2273 = vand.u32 2147483647, %v1453
        %vm2274 = vcmp.eq.f32.partialorder %v2273, 8.507059e+37
        %v2275 = vand.u32 %v1453, 2147483648
        %v2276 = vor.u32 1.1754944e-38, %v2275
        %v2277 = vsel %vm2274, %v2276, %v2272
        %v2278 = vrcp.pop %v1455
        %v2279 = vmul.f32 %v1455, %v2278
        %v2280 = vsub.f32 1.0, %v2279
        %v2281 = vmul.f32 %v2278, %v2280
        %v2282 = vadd.f32 %v2278, %v2281
        %vm2283 = vweird.f32 %v1455
        %vm2284 = vweird.f32 %v2278
        %vm2285 = vmor %vm2283, %vm2284
        %v2286 = vsel %vm2285, %v2278, %v2282
        %v2287 = vand.u32 2147483647, %v1455
        %vm2288 = vcmp.eq.f32.partialorder %v2287, 8.507059e+37
        %v2289 = vand.u32 %v1455, 2147483648
        %v2290 = vor.u32 1.1754944e-38, %v2289
        %v2291 = vsel %vm2288, %v2290, %v2286
        %v2292 = vrcp.pop %v1457
        %v2293 = vmul.f32 %v1457, %v2292
        %v2294 = vsub.f32 1.0, %v2293
        %v2295 = vmul.f32 %v2292, %v2294
        %v2296 = vadd.f32 %v2292, %v2295
        %vm2297 = vweird.f32 %v1457
        %vm2298 = vweird.f32 %v2292
        %vm2299 = vmor %vm2297, %vm2298
        %v2300 = vsel %vm2299, %v2292, %v2296
        %v2301 = vand.u32 2147483647, %v1457
        %vm2302 = vcmp.eq.f32.partialorder %v2301, 8.507059e+37
        %v2303 = vand.u32 %v1457, 2147483648
        %v2304 = vor.u32 1.1754944e-38, %v2303
        %v2305 = vsel %vm2302, %v2304, %v2300
        %v2306 = vrcp.pop %v1459
        %v2307 = vmul.f32 %v1459, %v2306
        %v2308 = vsub.f32 1.0, %v2307
        %v2309 = vmul.f32 %v2306, %v2308
        %v2310 = vadd.f32 %v2306, %v2309
        %vm2311 = vweird.f32 %v1459
        %vm2312 = vweird.f32 %v2306
        %vm2313 = vmor %vm2311, %vm2312
        %v2314 = vsel %vm2313, %v2306, %v2310
        %v2315 = vand.u32 2147483647, %v1459
        %vm2316 = vcmp.eq.f32.partialorder %v2315, 8.507059e+37
        %v2317 = vand.u32 %v1459, 2147483648
        %v2318 = vor.u32 1.1754944e-38, %v2317
        %v2319 = vsel %vm2316, %v2318, %v2314
        %v2320 = vrcp.pop %v1461
        %v2321 = vmul.f32 %v1461, %v2320
        %v2322 = vsub.f32 1.0, %v2321
        %v2323 = vmul.f32 %v2320, %v2322
        %v2324 = vadd.f32 %v2320, %v2323
        %vm2325 = vweird.f32 %v1461
        %vm2326 = vweird.f32 %v2320
        %vm2327 = vmor %vm2325, %vm2326
        %v2328 = vsel %vm2327, %v2320, %v2324
        %v2329 = vand.u32 2147483647, %v1461
        %vm2330 = vcmp.eq.f32.partialorder %v2329, 8.507059e+37
        %v2331 = vand.u32 %v1461, 2147483648
        %v2332 = vor.u32 1.1754944e-38, %v2331
        %v2333 = vsel %vm2330, %v2332, %v2328
        %v2334 = vrcp.pop %v1463
        %v2335 = vmul.f32 %v1463, %v2334
        %v2336 = vsub.f32 1.0, %v2335
        %v2337 = vmul.f32 %v2334, %v2336
        %v2338 = vadd.f32 %v2334, %v2337
        %vm2339 = vweird.f32 %v1463
        %vm2340 = vweird.f32 %v2334
        %vm2341 = vmor %vm2339, %vm2340
        %v2342 = vsel %vm2341, %v2334, %v2338
        %v2343 = vand.u32 2147483647, %v1463
        %vm2344 = vcmp.eq.f32.partialorder %v2343, 8.507059e+37
        %v2345 = vand.u32 %v1463, 2147483648
        %v2346 = vor.u32 1.1754944e-38, %v2345
        %v2347 = vsel %vm2344, %v2346, %v2342
        %v2348 = vrcp.pop %v1465
        %v2349 = vmul.f32 %v1465, %v2348
        %v2350 = vsub.f32 1.0, %v2349
        %v2351 = vmul.f32 %v2348, %v2350
        %v2352 = vadd.f32 %v2348, %v2351
        %vm2353 = vweird.f32 %v1465
        %vm2354 = vweird.f32 %v2348
        %vm2355 = vmor %vm2353, %vm2354
        %v2356 = vsel %vm2355, %v2348, %v2352
        %v2357 = vand.u32 2147483647, %v1465
        %vm2358 = vcmp.eq.f32.partialorder %v2357, 8.507059e+37
        %v2359 = vand.u32 %v1465, 2147483648
        %v2360 = vor.u32 1.1754944e-38, %v2359
        %v2361 = vsel %vm2358, %v2360, %v2356
        %v2362 = vmul.f32 %v1211, %v1479
        %v2363 = vmul.f32 %v1213, %v1493
        %v2364 = vmul.f32 %v1215, %v1507
        %v2365 = vmul.f32 %v1217, %v1521
        %v2366 = vmul.f32 %v1219, %v1535
        %v2367 = vmul.f32 %v1221, %v1549
        %v2368 = vmul.f32 %v1223, %v1563
        %v2369 = vmul.f32 %v1225, %v1577
        %v2370 = vmul.f32 %v1227, %v1591
        %v2371 = vmul.f32 %v1229, %v1605
        %v2372 = vmul.f32 %v1231, %v1619
        %v2373 = vmul.f32 %v1233, %v1633
        %v2374 = vmul.f32 %v1235, %v1647
        %v2375 = vmul.f32 %v1237, %v1661
        %v2376 = vmul.f32 %v1239, %v1675
        %v2377 = vmul.f32 %v1241, %v1689
        %v2378 = vmul.f32 %v1243, %v1703
        %v2379 = vmul.f32 %v1245, %v1717
        %v2380 = vmul.f32 %v1247, %v1731
        %v2381 = vmul.f32 %v1249, %v1745
        %v2382 = vmul.f32 %v1251, %v1759
        %v2383 = vmul.f32 %v1253, %v1773
        %v2384 = vmul.f32 %v1255, %v1787
        %v2385 = vmul.f32 %v1257, %v1801
        %v2386 = vmul.f32 %v1259, %v1815
        %v2387 = vmul.f32 %v1261, %v1829
        %v2388 = vmul.f32 %v1263, %v1843
        %v2389 = vmul.f32 %v1265, %v1857
        %v2390 = vmul.f32 %v1267, %v1871
        %v2391 = vmul.f32 %v1269, %v1885
        %v2392 = vmul.f32 %v1271, %v1899
        %v2393 = vmul.f32 %v1273, %v1913
        %v2394 = vmul.f32 %v1275, %v1927
        %v2395 = vmul.f32 %v1277, %v1941
        %v2396 = vmul.f32 %v1279, %v1955
        %v2397 = vmul.f32 %v1281, %v1969
        %v2398 = vmul.f32 %v1283, %v1983
        %v2399 = vmul.f32 %v1285, %v1997
        %v2400 = vmul.f32 %v1287, %v2011
        %v2401 = vmul.f32 %v1289, %v2025
        %v2402 = vmul.f32 %v1291, %v2039
        %v2403 = vmul.f32 %v1293, %v2053
        %v2404 = vmul.f32 %v1295, %v2067
        %v2405 = vmul.f32 %v1297, %v2081
        %v2406 = vmul.f32 %v1299, %v2095
        %v2407 = vmul.f32 %v1301, %v2109
        %v2408 = vmul.f32 %v1303, %v2123
        %v2409 = vmul.f32 %v1305, %v2137
        %v2410 = vmul.f32 %v1307, %v2151
        %v2411 = vmul.f32 %v1309, %v2165
        %v2412 = vmul.f32 %v1311, %v2179
        %v2413 = vmul.f32 %v1313, %v2193
        %v2414 = vmul.f32 %v1315, %v2207
        %v2415 = vmul.f32 %v1317, %v2221
        %v2416 = vmul.f32 %v1319, %v2235
        %v2417 = vmul.f32 %v1321, %v2249
        %v2418 = vmul.f32 %v1323, %v2263
        %v2419 = vmul.f32 %v1325, %v2277
        %v2420 = vmul.f32 %v1327, %v2291
        %v2421 = vmul.f32 %v1329, %v2305
        %v2422 = vmul.f32 %v1331, %v2319
        %v2423 = vmul.f32 %v1333, %v2333
        %v2424 = vmul.f32 %v1335, %v2347
        %v2425 = vmul.f32 %v1337, %v2361
        %2426 = vmatpush.msra.mxu0 %v289
        %2427 = vmatpush.msra.mxu0 %v288
        %2428 = vmatpush.msra.mxu0 %v287
        %2429 = vmatpush.msra.mxu0 %v286
        %2430 = vmatpush.msra.mxu0 %v285
        %2431 = vmatpush.msra.mxu0 %v284
        %2432 = vmatpush.msra.mxu0 %v283
        %2433 = vmatpush.msra.mxu0 %v282
        %2434 = vmatpush.msra.mxu0 %v281
        %2435 = vmatpush.msra.mxu0 %v280
        %2436 = vmatpush.msra.mxu0 %v279
        %2437 = vmatpush.msra.mxu0 %v278
        %2438 = vmatpush.msra.mxu0 %v277
        %2439 = vmatpush.msra.mxu0 %v276
        %2440 = vmatpush.msra.mxu0 %v275
        %2441 = vmatpush.msra.mxu0 %v274
        %2442 = vmatmul.f32.gmra.mxu0 %v2362
        %v2443 = vpop.f32.mrf.mxu0
        %v2444 = vadd.f32 0.0, %v2443
        %2445 = vmatmul.f32.gmra.mxu0 %v2363
        %v2446 = vpop.f32.mrf.mxu0
        %v2447 = vadd.f32 0.0, %v2446
        %2448 = vmatmul.f32.gmra.mxu0 %v2364
        %v2449 = vpop.f32.mrf.mxu0
        %v2450 = vadd.f32 0.0, %v2449
        %2451 = vmatmul.f32.gmra.mxu0 %v2365
        %v2452 = vpop.f32.mrf.mxu0
        %v2453 = vadd.f32 0.0, %v2452
        %2454 = vmatmul.f32.gmra.mxu0 %v2366
        %v2455 = vpop.f32.mrf.mxu0
        %v2456 = vadd.f32 0.0, %v2455
        %2457 = vmatmul.f32.gmra.mxu0 %v2367
        %v2458 = vpop.f32.mrf.mxu0
        %v2459 = vadd.f32 0.0, %v2458
        %2460 = vmatmul.f32.gmra.mxu0 %v2368
        %v2461 = vpop.f32.mrf.mxu0
        %v2462 = vadd.f32 0.0, %v2461
        %2463 = vmatmul.f32.gmra.mxu0 %v2369
        %v2464 = vpop.f32.mrf.mxu0
        %v2465 = vadd.f32 0.0, %v2464
        %2466 = vmatmul.f32.gmra.mxu0 %v2370
        %v2467 = vpop.f32.mrf.mxu0
        %v2468 = vadd.f32 0.0, %v2467
        %2469 = vmatmul.f32.gmra.mxu0 %v2371
        %v2470 = vpop.f32.mrf.mxu0
        %v2471 = vadd.f32 0.0, %v2470
        %2472 = vmatmul.f32.gmra.mxu0 %v2372
        %v2473 = vpop.f32.mrf.mxu0
        %v2474 = vadd.f32 0.0, %v2473
        %2475 = vmatmul.f32.gmra.mxu0 %v2373
        %v2476 = vpop.f32.mrf.mxu0
        %v2477 = vadd.f32 0.0, %v2476
        %2478 = vmatmul.f32.gmra.mxu0 %v2374
        %v2479 = vpop.f32.mrf.mxu0
        %v2480 = vadd.f32 0.0, %v2479
        %2481 = vmatmul.f32.gmra.mxu0 %v2375
        %v2482 = vpop.f32.mrf.mxu0
        %v2483 = vadd.f32 0.0, %v2482
        %2484 = vmatmul.f32.gmra.mxu0 %v2376
        %v2485 = vpop.f32.mrf.mxu0
        %v2486 = vadd.f32 0.0, %v2485
        %2487 = vmatmul.f32.gmra.mxu0 %v2377
        %v2488 = vpop.f32.mrf.mxu0
        %v2489 = vadd.f32 0.0, %v2488
        %2490 = vmatmul.f32.gmra.mxu0 %v2378
        %v2491 = vpop.f32.mrf.mxu0
        %v2492 = vadd.f32 0.0, %v2491
        %2493 = vmatmul.f32.gmra.mxu0 %v2379
        %v2494 = vpop.f32.mrf.mxu0
        %v2495 = vadd.f32 0.0, %v2494
        %2496 = vmatmul.f32.gmra.mxu0 %v2380
        %v2497 = vpop.f32.mrf.mxu0
        %v2498 = vadd.f32 0.0, %v2497
        %2499 = vmatmul.f32.gmra.mxu0 %v2381
        %v2500 = vpop.f32.mrf.mxu0
        %v2501 = vadd.f32 0.0, %v2500
        %2502 = vmatmul.f32.gmra.mxu0 %v2382
        %v2503 = vpop.f32.mrf.mxu0
        %v2504 = vadd.f32 0.0, %v2503
        %2505 = vmatmul.f32.gmra.mxu0 %v2383
        %v2506 = vpop.f32.mrf.mxu0
        %v2507 = vadd.f32 0.0, %v2506
        %2508 = vmatmul.f32.gmra.mxu0 %v2384
        %v2509 = vpop.f32.mrf.mxu0
        %v2510 = vadd.f32 0.0, %v2509
        %2511 = vmatmul.f32.gmra.mxu0 %v2385
        %v2512 = vpop.f32.mrf.mxu0
        %v2513 = vadd.f32 0.0, %v2512
        %2514 = vmatmul.f32.gmra.mxu0 %v2386
        %v2515 = vpop.f32.mrf.mxu0
        %v2516 = vadd.f32 0.0, %v2515
        %2517 = vmatmul.f32.gmra.mxu0 %v2387
        %v2518 = vpop.f32.mrf.mxu0
        %v2519 = vadd.f32 0.0, %v2518
        %2520 = vmatmul.f32.gmra.mxu0 %v2388
        %v2521 = vpop.f32.mrf.mxu0
        %v2522 = vadd.f32 0.0, %v2521
        %2523 = vmatmul.f32.gmra.mxu0 %v2389
        %v2524 = vpop.f32.mrf.mxu0
        %v2525 = vadd.f32 0.0, %v2524
        %2526 = vmatmul.f32.gmra.mxu0 %v2390
        %v2527 = vpop.f32.mrf.mxu0
        %v2528 = vadd.f32 0.0, %v2527
        %2529 = vmatmul.f32.gmra.mxu0 %v2391
        %v2530 = vpop.f32.mrf.mxu0
        %v2531 = vadd.f32 0.0, %v2530
        %2532 = vmatmul.f32.gmra.mxu0 %v2392
        %v2533 = vpop.f32.mrf.mxu0
        %v2534 = vadd.f32 0.0, %v2533
        %2535 = vmatmul.f32.gmra.mxu0 %v2393
        %v2536 = vpop.f32.mrf.mxu0
        %v2537 = vadd.f32 0.0, %v2536
        %2538 = vmatmul.f32.gmra.mxu0 %v2394
        %v2539 = vpop.f32.mrf.mxu0
        %v2540 = vadd.f32 0.0, %v2539
        %2541 = vmatmul.f32.gmra.mxu0 %v2395
        %v2542 = vpop.f32.mrf.mxu0
        %v2543 = vadd.f32 0.0, %v2542
        %2544 = vmatmul.f32.gmra.mxu0 %v2396
        %v2545 = vpop.f32.mrf.mxu0
        %v2546 = vadd.f32 0.0, %v2545
        %2547 = vmatmul.f32.gmra.mxu0 %v2397
        %v2548 = vpop.f32.mrf.mxu0
        %v2549 = vadd.f32 0.0, %v2548
        %2550 = vmatmul.f32.gmra.mxu0 %v2398
        %v2551 = vpop.f32.mrf.mxu0
        %v2552 = vadd.f32 0.0, %v2551
        %2553 = vmatmul.f32.gmra.mxu0 %v2399
        %v2554 = vpop.f32.mrf.mxu0
        %v2555 = vadd.f32 0.0, %v2554
        %2556 = vmatmul.f32.gmra.mxu0 %v2400
        %v2557 = vpop.f32.mrf.mxu0
        %v2558 = vadd.f32 0.0, %v2557
        %2559 = vmatmul.f32.gmra.mxu0 %v2401
        %v2560 = vpop.f32.mrf.mxu0
        %v2561 = vadd.f32 0.0, %v2560
        %2562 = vmatmul.f32.gmra.mxu0 %v2402
        %v2563 = vpop.f32.mrf.mxu0
        %v2564 = vadd.f32 0.0, %v2563
        %2565 = vmatmul.f32.gmra.mxu0 %v2403
        %v2566 = vpop.f32.mrf.mxu0
        %v2567 = vadd.f32 0.0, %v2566
        %2568 = vmatmul.f32.gmra.mxu0 %v2404
        %v2569 = vpop.f32.mrf.mxu0
        %v2570 = vadd.f32 0.0, %v2569
        %2571 = vmatmul.f32.gmra.mxu0 %v2405
        %v2572 = vpop.f32.mrf.mxu0
        %v2573 = vadd.f32 0.0, %v2572
        %2574 = vmatmul.f32.gmra.mxu0 %v2406
        %v2575 = vpop.f32.mrf.mxu0
        %v2576 = vadd.f32 0.0, %v2575
        %2577 = vmatmul.f32.gmra.mxu0 %v2407
        %v2578 = vpop.f32.mrf.mxu0
        %v2579 = vadd.f32 0.0, %v2578
        %2580 = vmatmul.f32.gmra.mxu0 %v2408
        %v2581 = vpop.f32.mrf.mxu0
        %v2582 = vadd.f32 0.0, %v2581
        %2583 = vmatmul.f32.gmra.mxu0 %v2409
        %v2584 = vpop.f32.mrf.mxu0
        %v2585 = vadd.f32 0.0, %v2584
        %2586 = vmatmul.f32.gmra.mxu0 %v2410
        %v2587 = vpop.f32.mrf.mxu0
        %v2588 = vadd.f32 0.0, %v2587
        %2589 = vmatmul.f32.gmra.mxu0 %v2411
        %v2590 = vpop.f32.mrf.mxu0
        %v2591 = vadd.f32 0.0, %v2590
        %2592 = vmatmul.f32.gmra.mxu0 %v2412
        %v2593 = vpop.f32.mrf.mxu0
        %v2594 = vadd.f32 0.0, %v2593
        %2595 = vmatmul.f32.gmra.mxu0 %v2413
        %v2596 = vpop.f32.mrf.mxu0
        %v2597 = vadd.f32 0.0, %v2596
        %2598 = vmatmul.f32.gmra.mxu0 %v2414
        %v2599 = vpop.f32.mrf.mxu0
        %v2600 = vadd.f32 0.0, %v2599
        %2601 = vmatmul.f32.gmra.mxu0 %v2415
        %v2602 = vpop.f32.mrf.mxu0
        %v2603 = vadd.f32 0.0, %v2602
        %2604 = vmatmul.f32.gmra.mxu0 %v2416
        %v2605 = vpop.f32.mrf.mxu0
        %v2606 = vadd.f32 0.0, %v2605
        %2607 = vmatmul.f32.gmra.mxu0 %v2417
        %v2608 = vpop.f32.mrf.mxu0
        %v2609 = vadd.f32 0.0, %v2608
        %2610 = vmatmul.f32.gmra.mxu0 %v2418
        %v2611 = vpop.f32.mrf.mxu0
        %v2612 = vadd.f32 0.0, %v2611
        %2613 = vmatmul.f32.gmra.mxu0 %v2419
        %v2614 = vpop.f32.mrf.mxu0
        %v2615 = vadd.f32 0.0, %v2614
        %2616 = vmatmul.f32.gmra.mxu0 %v2420
        %v2617 = vpop.f32.mrf.mxu0
        %v2618 = vadd.f32 0.0, %v2617
        %2619 = vmatmul.f32.gmra.mxu0 %v2421
        %v2620 = vpop.f32.mrf.mxu0
        %v2621 = vadd.f32 0.0, %v2620
        %2622 = vmatmul.f32.gmra.mxu0 %v2422
        %v2623 = vpop.f32.mrf.mxu0
        %v2624 = vadd.f32 0.0, %v2623
        %2625 = vmatmul.f32.gmra.mxu0 %v2423
        %v2626 = vpop.f32.mrf.mxu0
        %v2627 = vadd.f32 0.0, %v2626
        %2628 = vmatmul.f32.gmra.mxu0 %v2424
        %v2629 = vpop.f32.mrf.mxu0
        %v2630 = vadd.f32 0.0, %v2629
        %2631 = vmatmul.f32.gmra.mxu0 %v2425
        %v2632 = vpop.f32.mrf.mxu0
        %v2633 = vadd.f32 0.0, %v2632
        %2634 = vdwg.mxu0
        %2635 = vst [vmem:[%s207] sm:$0xff] %v2444
        %2636 = vst [vmem:[%s207 + $0x8] sm:$0xff] %v2447
        %2637 = vst [vmem:[%s207 + $0x10] sm:$0xff] %v2450
        %2638 = vst [vmem:[%s207 + $0x18] sm:$0xff] %v2453
        %2639 = vst [vmem:[%s207 + $0x20] sm:$0xff] %v2456
        %2640 = vst [vmem:[%s207 + $0x28] sm:$0xff] %v2459
        %2641 = vst [vmem:[%s207 + $0x30] sm:$0xff] %v2462
        %2642 = vst [vmem:[%s207 + $0x38] sm:$0xff] %v2465
        %2643 = vst [vmem:[%s207 + $0x40] sm:$0xff] %v2468
        %2644 = vst [vmem:[%s207 + $0x48] sm:$0xff] %v2471
        %2645 = vst [vmem:[%s207 + $0x50] sm:$0xff] %v2474
        %2646 = vst [vmem:[%s207 + $0x58] sm:$0xff] %v2477
        %2647 = vst [vmem:[%s207 + $0x60] sm:$0xff] %v2480
        %2648 = vst [vmem:[%s207 + $0x68] sm:$0xff] %v2483
        %2649 = vst [vmem:[%s207 + $0x70] sm:$0xff] %v2486
        %2650 = vst [vmem:[%s207 + $0x78] sm:$0xff] %v2489
        %2651 = vst [vmem:[%s207 + $0x80] sm:$0xff] %v2492
        %2652 = vst [vmem:[%s207 + $0x88] sm:$0xff] %v2495
        %2653 = vst [vmem:[%s207 + $0x90] sm:$0xff] %v2498
        %2654 = vst [vmem:[%s207 + $0x98] sm:$0xff] %v2501
        %2655 = vst [vmem:[%s207 + $0xa0] sm:$0xff] %v2504
        %2656 = vst [vmem:[%s207 + $0xa8] sm:$0xff] %v2507
        %2657 = vst [vmem:[%s207 + $0xb0] sm:$0xff] %v2510
        %2658 = vst [vmem:[%s207 + $0xb8] sm:$0xff] %v2513
        %2659 = vst [vmem:[%s207 + $0xc0] sm:$0xff] %v2516
        %2660 = vst [vmem:[%s207 + $0xc8] sm:$0xff] %v2519
        %2661 = vst [vmem:[%s207 + $0xd0] sm:$0xff] %v2522
        %2662 = vst [vmem:[%s207 + $0xd8] sm:$0xff] %v2525
        %2663 = vst [vmem:[%s207 + $0xe0] sm:$0xff] %v2528
        %2664 = vst [vmem:[%s207 + $0xe8] sm:$0xff] %v2531
        %2665 = vst [vmem:[%s207 + $0xf0] sm:$0xff] %v2534
        %2666 = vst [vmem:[%s207 + $0xf8] sm:$0xff] %v2537
        %2667 = vst [vmem:[%s207 + $0x100] sm:$0xff] %v2540
        %2668 = vst [vmem:[%s207 + $0x108] sm:$0xff] %v2543
        %2669 = vst [vmem:[%s207 + $0x110] sm:$0xff] %v2546
        %2670 = vst [vmem:[%s207 + $0x118] sm:$0xff] %v2549
        %2671 = vst [vmem:[%s207 + $0x120] sm:$0xff] %v2552
        %2672 = vst [vmem:[%s207 + $0x128] sm:$0xff] %v2555
        %2673 = vst [vmem:[%s207 + $0x130] sm:$0xff] %v2558
        %2674 = vst [vmem:[%s207 + $0x138] sm:$0xff] %v2561
        %2675 = vst [vmem:[%s207 + $0x140] sm:$0xff] %v2564
        %2676 = vst [vmem:[%s207 + $0x148] sm:$0xff] %v2567
        %2677 = vst [vmem:[%s207 + $0x150] sm:$0xff] %v2570
        %2678 = vst [vmem:[%s207 + $0x158] sm:$0xff] %v2573
        %2679 = vst [vmem:[%s207 + $0x160] sm:$0xff] %v2576
        %2680 = vst [vmem:[%s207 + $0x168] sm:$0xff] %v2579
        %2681 = vst [vmem:[%s207 + $0x170] sm:$0xff] %v2582
        %2682 = vst [vmem:[%s207 + $0x178] sm:$0xff] %v2585
        %2683 = vst [vmem:[%s207 + $0x180] sm:$0xff] %v2588
        %2684 = vst [vmem:[%s207 + $0x188] sm:$0xff] %v2591
        %2685 = vst [vmem:[%s207 + $0x190] sm:$0xff] %v2594
        %2686 = vst [vmem:[%s207 + $0x198] sm:$0xff] %v2597
        %2687 = vst [vmem:[%s207 + $0x1a0] sm:$0xff] %v2600
        %2688 = vst [vmem:[%s207 + $0x1a8] sm:$0xff] %v2603
        %2689 = vst [vmem:[%s207 + $0x1b0] sm:$0xff] %v2606
        %2690 = vst [vmem:[%s207 + $0x1b8] sm:$0xff] %v2609
        %2691 = vst [vmem:[%s207 + $0x1c0] sm:$0xff] %v2612
        %2692 = vst [vmem:[%s207 + $0x1c8] sm:$0xff] %v2615
        %2693 = vst [vmem:[%s207 + $0x1d0] sm:$0xff] %v2618
        %2694 = vst [vmem:[%s207 + $0x1d8] sm:$0xff] %v2621
        %2695 = vst [vmem:[%s207 + $0x1e0] sm:$0xff] %v2624
        %2696 = vst [vmem:[%s207 + $0x1e8] sm:$0xff] %v2627
        %2697 = vst [vmem:[%s207 + $0x1f0] sm:$0xff] %v2630
        %2698 = vst [vmem:[%s207 + $0x1f8] sm:$0xff] %v2633
        %s2699 = sand.u32 %s97, 1
        %s2700 = scalar_lea.sflag [#allocation4], %s2699
        %s2701 = sand.u32 %s97, 1
        %s2702 = smul.addr %s2701, 512
        %s2703 = scalar_lea.vmem [#allocation7], %s2702
        // Predicated region
        $region41: #{tpu_custom_call.1} parent=31 // pred_check
          %p2704 = pneg %p107
        $region42: #{tpu_custom_call.1} parent=31 // pred_check_branch
          %2706 = sbr.rel (%p2704) target = $region44
        $region43: #{tpu_custom_call.1} parent=31 // pred_region
          %s2707 = smul.u32 64, %s21
          %2709 = vsyncadd %s2700, 0
          %s2710 = smul.addr %s2707, 8
          %s2711 = scalar_lea.hbm %s3, %s2710
          %s2712 = sshll.u32 %s2703, 4
          %s2713 = int_to_ptr.vmem [resolvable:$true] %s2712
          %s2714 = sshll.u32 %s2711, 4
          %s2715 = int_to_ptr.hbm [resolvable:$true] %s2714
          %2720 = dma.vmem_to_hbm [thread:$0]  %s2713, 8192, %s2715, %s2700, 128, 128, 8
        $region44: #{tpu_custom_call.1} parent=31 // pred_fallthru
          _
      $region32: #{tpu_custom_call.1} parent=5 // pred_fallthru
        _
      %p2721 = scmp.le.s32.totalorder 2, %s16
      // Predicated region
      $region45: #{tpu_custom_call.1} parent=5 // pred_check
        %p2722 = pneg %p2721
      $region46: #{tpu_custom_call.1} parent=5 // pred_check_branch
        %2724 = sbr.rel (%p2722) target = $region48
      $region47: #{tpu_custom_call.1} parent=5 // pred_region
        %s2725 = ssub.s32 %s16, 2
        // Predicated region
        $region49: #{tpu_custom_call.1} parent=47 // pred_check
          %p2726 = pneg %p113
        $region50: #{tpu_custom_call.1} parent=47 // pred_check_branch
          %2728 = sbr.rel (%p2726) target = $region52
        $region51: #{tpu_custom_call.1} parent=47 // pred_region
          %s2729 = sand.u32 %s98, 1
          %s2730 = scalar_lea.sflag [#allocation4], %s2729
          %s2731 = sand.u32 %s98, 1
          %s2732 = smul.addr %s2731, 512
          %s2733 = scalar_lea.vmem [#allocation7], %s2732
          %2735 = dma.done %s2730, 8192
        $region52: #{tpu_custom_call.1} parent=47 // pred_fallthru
          _
      $region48: #{tpu_custom_call.1} parent=5 // pred_fallthru
        _
    $region6: #{tpu_custom_call.1} parent=1 // loop_footer
      %s20 = sadd.s32 1, %s16
    $region7: #{tpu_custom_call.1} parent=1 // loop_footer_branch
      %15 = sbr.rel target = $region3
    $region8: #{tpu_custom_call.1} parent=1 // loop_exit
      _
    %2736 = vsyncpa [#allocation3], 1
    %s2737 = scalar_lea.sflag [#allocation3], 1
    %2738 = vsyncpa %s2737, 1
    %2739 = vsyncpa [#allocation6], 1
    %2740 = vsyncpa [#allocation4], 1
    %s2741 = scalar_lea.sflag [#allocation4], 1
    %2742 = vsyncpa %s2741, 1

</llo_original>
